<compile_context>
chip_gen: v7x
topology: tpu7x:2x2x1
jax: 0.10.0
libtpu: 0.0.40
codegen_flags: <defaults>
</compile_context>

<pallas_src>
import functools

import jax
import jax.numpy as jnp
import numpy as np
from jax.experimental import pallas as pl
from jax.experimental.pallas import tpu as pltpu


# ------------------------------ Pallas kernel -------------------------------

def _qam_kernel(sp_ref, tp_ref, w_ref, b_ref, o_ref):
    attn = w_ref.shape[1]                       # attention_dim (static)

    # temporal projection: (bm, Td) @ (Td, attn) on the MXU.
    # Weight arrives already in bf16 (grid-invariant, single-buffered);
    # temporal is cast in-kernel only if it arrives as f32 (no-op for bf16 input).
    tproj = (
        jnp.dot(
            tp_ref[...].astype(jnp.bfloat16),
            w_ref[...],
            preferred_element_type=jnp.float32,
        )
        + b_ref[...]
    )

    sp = sp_ref[...].astype(jnp.float32)        # (bm, spatial_dim)

    # attention score: per-row dot(spatial, temporal_proj) -> (bm, 1)  (XLU lane reduce)
    scores = jnp.sum(sp * tproj, axis=-1, keepdims=True)

    # softmax along the singleton attention axis (size 1):
    #   softmax(s) = exp(s - s) = 1, written this way so NaN/Inf scores
    #   propagate exactly like torch.softmax.
    weights = jnp.exp(scores - scores)          # (bm, 1)

    attended = weights * tproj                  # (bm, attn), lane-broadcast of weights

    # fused_features = concat([spatial, attended], dim=-1): write the two
    # 512-wide halves of the lane-dense (bm, 1024) output tile directly.
    o_ref[:, :attn] = sp
    o_ref[:, attn:] = attended


# -------------------------------- wrapper ------------------------------------

@functools.partial(jax.jit, static_argnames=("block_rows",))
def qam_forward(spatial, temporal, w_t, b_t, *, block_rows=512):
    """QaM forward.

    w_t is (temporal_dim, attention_dim), i.e. torch weight.T — ideally already
    cached as bf16 at the model level (the astype below is then a no-op).
    temporal may be f32 or bf16; bf16 halves its HBM traffic.
    """
    B, S = spatial.shape
    Td = temporal.shape[1]
    A = w_t.shape[1]
    # The torch bmm / concat require spatial_dim == attention_dim; fail loudly.
    assert S == A, f"spatial_dim ({S}) must equal attention_dim ({A})"

    w_bf = w_t.astype(jnp.bfloat16)             # no-op if cached as bf16 upstream
    b_f32 = b_t.reshape(1, A).astype(jnp.float32)

    # Row tile: multiple of 8 (sublane); Pallas masks the ragged last block.
    bm = min(block_rows, max(8, pl.cdiv(B, 8) * 8))
    grid = (pl.cdiv(B, bm),)

    out = pl.pallas_call(
        _qam_kernel,
        out_shape=jax.ShapeDtypeStruct((B, 2 * A), jnp.float32),
        grid_spec=pltpu.PrefetchScalarGridSpec(
            num_scalar_prefetch=0,
            grid=grid,
            in_specs=[
                pl.BlockSpec((bm, S), lambda i: (i, 0)),    # spatial rows
                pl.BlockSpec((bm, Td), lambda i: (i, 0)),   # temporal rows
                # grid-invariant blocks: resident in VMEM, single-buffered
                pl.BlockSpec((Td, A), lambda i: (0, 0),
                             pipeline_mode=pl.Buffered(1)),  # bf16 weight
                pl.BlockSpec((1, A), lambda i: (0, 0),
                             pipeline_mode=pl.Buffered(1)),  # bias
            ],
            out_specs=pl.BlockSpec((bm, 2 * A), lambda i: (i, 0)),
        ),
        compiler_params=pltpu.CompilerParams(
            dimension_semantics=("parallel",),               # shard rows across TCs
            vmem_limit_bytes=32 * 1024 * 1024,               # ~17 MiB used at bm=512
        ),
    )(spatial, temporal, w_bf, b_f32)

    return out


# ------------------------------ pure-JAX reference ---------------------------

def _qam_reference(spatial, temporal, w_t, b_t):
    tproj = temporal @ w_t + b_t
    scores = jnp.sum(spatial * tproj, axis=-1, keepdims=True)   # (B, 1)
    weights = jax.nn.softmax(scores, axis=-1)                   # singleton axis -> 1
    attended = weights * tproj
    return jnp.concatenate([spatial, attended], axis=-1)


# ---------------------------------- main --------------------------------------

if __name__ == "__main__":
    B = 8
    SPATIAL_DIM, TEMPORAL_DIM, ATTENTION_DIM = 512, 1408, 512   # module defaults

    key = jax.random.PRNGKey(0)
    k1, k2, k3, k4 = jax.random.split(key, 4)

    spatial = jax.random.normal(k1, (B, SPATIAL_DIM), jnp.float32)
    temporal = jax.random.normal(k2, (B, TEMPORAL_DIM), jnp.float32)
    # nn.Linear(temporal_dim, attention_dim) params, stored as (in, out) = weight.T
    w_t = jax.random.normal(k3, (TEMPORAL_DIM, ATTENTION_DIM), jnp.float32) * 0.02
    b_t = jax.random.normal(k4, (ATTENTION_DIM,), jnp.float32) * 0.02

    # "Model-level" bf16 cache of the projection weight (done once, not per call).
    w_bf16 = w_t.astype(jnp.bfloat16)

    out = qam_forward(spatial, temporal, w_bf16, b_t)
    out = jax.block_until_ready(out)
    assert out.shape == (B, SPATIAL_DIM + ATTENTION_DIM), out.shape

    # correctness vs f32 reference (bf16 MXU feed -> loose tolerance)
    ref = _qam_reference(spatial, temporal, w_t, b_t)
    np.testing.assert_allclose(np.asarray(out), np.asarray(ref), rtol=5e-2, atol=5e-2)

    print("KERNEL_OK")
</pallas_src>

<mosaic_0001>
module attributes {stable_mosaic.version = 11 : i64} {
  func.func @_qam_kernel(%arg0: i32, %arg1: memref<8x512xf32, #tpu.memory_space<vmem>>, %arg2: memref<8x1408xf32, #tpu.memory_space<vmem>>, %arg3: memref<1408x512xbf16, #tpu.memory_space<vmem>>, %arg4: memref<1x512xf32, #tpu.memory_space<vmem>>, %arg5: memref<8x1024xf32, #tpu.memory_space<vmem>>) attributes {dimension_semantics = [#tpu.dimension_semantics<parallel>], iteration_bounds = array<i64: 1>, scalar_prefetch = 0 : i64, scratch_operands = 0 : i64, tpu.core_type = #tpu.core_type<tc>, window_params = [{transform_indices = @transform_0, window_bounds = array<i64: 8, 512>}, {transform_indices = @transform_1, window_bounds = array<i64: 8, 1408>}, {pipeline_mode = #tpu.pipeline_mode<synchronous>, transform_indices = @transform_2, window_bounds = array<i64: 1408, 512>}, {pipeline_mode = #tpu.pipeline_mode<synchronous>, transform_indices = @transform_3, window_bounds = array<i64: 1, 512>}, {transform_indices = @transform_4, window_bounds = array<i64: 8, 1024>}]} {
    %c0 = arith.constant 0 : index
    %c0_0 = arith.constant 0 : index
    %0 = vector.load %arg2[%c0, %c0_0] : memref<8x1408xf32, #tpu.memory_space<vmem>>, vector<8x1408xf32>
    %1 = arith.truncf %0 : vector<8x1408xf32> to vector<8x1408xbf16>
    %c0_1 = arith.constant 0 : index
    %c0_2 = arith.constant 0 : index
    %2 = vector.load %arg3[%c0_1, %c0_2] : memref<1408x512xbf16, #tpu.memory_space<vmem>>, vector<1408x512xbf16>
    %cst = arith.constant dense<0.000000e+00> : vector<8x512xf32>
    %3 = tpu.matmul %1, %2, %cst {dimension_numbers = #tpu.dot_dimension_numbers<[1], [0], [0], [1], [0, 0, 1, 1], [], []>} : vector<8x1408xbf16>, vector<1408x512xbf16>, vector<8x512xf32> -> vector<8x512xf32>
    %c0_3 = arith.constant 0 : index
    %c0_4 = arith.constant 0 : index
    %4 = vector.load %arg4[%c0_3, %c0_4] : memref<1x512xf32, #tpu.memory_space<vmem>>, vector<1x512xf32>
    %5 = vector.broadcast %4 : vector<1x512xf32> to vector<8x512xf32>
    %6 = arith.addf %3, %5 : vector<8x512xf32>
    %c0_5 = arith.constant 0 : index
    %c0_6 = arith.constant 0 : index
    %7 = vector.load %arg1[%c0_5, %c0_6] : memref<8x512xf32, #tpu.memory_space<vmem>>, vector<8x512xf32>
    %8 = arith.mulf %7, %6 : vector<8x512xf32>
    %cst_7 = arith.constant dense<0.000000e+00> : vector<8xf32>
    %9 = vector.multi_reduction <add>, %8, %cst_7 [1] : vector<8x512xf32> to vector<8xf32>
    %10 = vector.shape_cast %9 : vector<8xf32> to vector<8x1xf32>
    %11 = arith.subf %10, %10 : vector<8x1xf32>
    %12 = math.exp %11 : vector<8x1xf32>
    %13 = vector.broadcast %12 : vector<8x1xf32> to vector<8x512xf32>
    %14 = arith.mulf %13, %6 : vector<8x512xf32>
    %c0_8 = arith.constant 0 : index
    %c0_9 = arith.constant 0 : index
    %15 = vector.load %arg5[%c0_8, %c0_9] : memref<8x1024xf32, #tpu.memory_space<vmem>>, vector<8x512xf32>
    tpu.vector_store %arg5[%c0_8, %c0_9], %7 {strides = array<i32>} : memref<8x1024xf32, #tpu.memory_space<vmem>>, vector<8x512xf32>,
    %c0_10 = arith.constant 0 : index
    %c512 = arith.constant 512 : index
    %16 = vector.load %arg5[%c0_10, %c512] : memref<8x1024xf32, #tpu.memory_space<vmem>>, vector<8x512xf32>
    tpu.vector_store %arg5[%c0_10, %c512], %14 {strides = array<i32>} : memref<8x1024xf32, #tpu.memory_space<vmem>>, vector<8x512xf32>,
    return
  }
  func.func @transform_0(%arg0: i32) -> (i32, i32) {
    %c0_i32 = arith.constant 0 : i32
    %c0_i32_0 = arith.constant 0 : i32
    return %arg0, %c0_i32 : i32, i32
  }
  func.func @transform_1(%arg0: i32) -> (i32, i32) {
    %c0_i32 = arith.constant 0 : i32
    %c0_i32_0 = arith.constant 0 : i32
    return %arg0, %c0_i32 : i32, i32
  }
  func.func @transform_2(%arg0: i32) -> (i32, i32) {
    %c0_i32 = arith.constant 0 : i32
    %c0_i32_0 = arith.constant 0 : i32
    %c0_i32_1 = arith.constant 0 : i32
    return %c0_i32, %c0_i32_0 : i32, i32
  }
  func.func @transform_3(%arg0: i32) -> (i32, i32) {
    %c0_i32 = arith.constant 0 : i32
    %c0_i32_0 = arith.constant 0 : i32
    %c0_i32_1 = arith.constant 0 : i32
    return %c0_i32, %c0_i32_0 : i32, i32
  }
  func.func @transform_4(%arg0: i32) -> (i32, i32) {
    %c0_i32 = arith.constant 0 : i32
    %c0_i32_0 = arith.constant 0 : i32
    return %arg0, %c0_i32 : i32, i32
  }
}

</mosaic_0001>

<llo_original>
// kernel: qam_forward.1
$region0: #{qam_forward.1}
  #allocation0 [shape = 'u32[]', space=smem, size = 0x4, offset = 0x4, fixed_abs, tag = 'smem constant byte address 0x4 - core index']
  #allocation1 [shape = 'u32[144,128]{1,0:T(1,128)}', space=vmem, size = 0x12000, scoped, tag = 'internal scratch']
  %s0 = inlined_call_operand.hbm [shape: f32[8,512], index: 0, kind: input, shape index: {}]
  %s1 = inlined_call_operand.hbm [shape: f32[8,1408], index: 1, kind: input, shape index: {}]
  %s2 = inlined_call_operand.hbm [shape: bf16[1408,512], index: 2, kind: input, shape index: {}]
  %s3 = inlined_call_operand.hbm [shape: f32[1,512], index: 3, kind: input, shape index: {}]
  %s4 = inlined_call_operand.hbm [shape: f32[8,1024], index: 4, kind: output, shape index: {}]
  %s5 = sld [smem:[#allocation0]]
  $region42: #{qam_forward.1} parent=0
    _
  %s7 = ssub.s32 1, %s5
  %s8 = scalar_select 0, %s7, %s5
  $region1: #{qam_forward.1} parent=0
    #allocation2 [shape = 'u8[16384]{0}', space=vmem, size = 0x4000, scoped, tag = 'input window, operand 0, single buffered']
    #allocation3 [shape = 's32[1]{0}', space=sflag, size = 0x4, scoped, tag = 'scoped memory for qam_forward.1']
    #allocation4 [shape = 's32[1]{0}', space=sflag, size = 0x4, scoped, tag = 'scoped memory for qam_forward.1']
    #allocation5 [shape = 'u8[45056]{0}', space=vmem, size = 0xb000, scoped, tag = 'input window, operand 1, single buffered']
    #allocation6 [shape = 's32[1]{0}', space=sflag, size = 0x4, scoped, tag = 'scoped memory for qam_forward.1']
    #allocation7 [shape = 'u8[1441792]{0}', space=vmem, size = 0x160000, scoped, tag = 'input window, operand 2, single buffered']
    #allocation8 [shape = 'u8[2048]{0}', space=vmem, size = 0x800, scoped, tag = 'input window, operand 3, single buffered']
    #allocation9 [shape = 's32[1]{0}', space=sflag, size = 0x4, scoped, tag = 'scoped memory for qam_forward.1']
    #allocation10 [shape = 'u8[32768]{0}', space=vmem, size = 0x8000, scoped, tag = 'output window, operand 0, single buffered']
    %9 = vsyncpa [#allocation3], 0
    %10 = vsyncpa [#allocation6], 0
    %11 = vsyncpa [#allocation9], 0
    %12 = vsyncpa [#allocation4], 0
    // Predicated region
    $region2: #{qam_forward.1} parent=1 // pred_check
      _
    $region3: #{qam_forward.1} parent=1 // pred_check_branch
      %14 = sbr.rel (0) target = $region5
    $region4: #{qam_forward.1} parent=1 // pred_region
      %s16 = ssub.s32 512, 512
      %17 = vsyncadd [#allocation3], %s16
      %s19 = sshll.u32 [#allocation2], 4
      %s20 = int_to_ptr.vmem [resolvable:$true] %s19
      %22 = dma.hbm_to_vmem [thread:$0]  %s0, 512, %s20, [#allocation3]
    $region5: #{qam_forward.1} parent=1 // pred_fallthru
      _
    // Predicated region
    $region6: #{qam_forward.1} parent=1 // pred_check
      _
    $region7: #{qam_forward.1} parent=1 // pred_check_branch
      %24 = sbr.rel (0) target = $region9
    $region8: #{qam_forward.1} parent=1 // pred_region
      %s26 = ssub.s32 1408, 1408
      %27 = vsyncadd [#allocation6], %s26
      %s29 = sshll.u32 [#allocation5], 4
      %s30 = int_to_ptr.vmem [resolvable:$true] %s29
      %32 = dma.hbm_to_vmem [thread:$0]  %s1, 1408, %s30, [#allocation6]
    $region9: #{qam_forward.1} parent=1 // pred_fallthru
      _
    // Predicated region
    $region10: #{qam_forward.1} parent=1 // pred_check
      _
    $region11: #{qam_forward.1} parent=1 // pred_check_branch
      %34 = sbr.rel (0) target = $region13
    $region12: #{qam_forward.1} parent=1 // pred_region
      %s36 = ssub.s32 45056, 45056
      %37 = vsyncadd [#allocation6], %s36
      %s38 = sshll.u32 [#allocation7], 4
      %s39 = int_to_ptr.vmem [resolvable:$true] %s38
      %44 = dma.hbm_to_vmem [thread:$0]  %s2, 45056, %s39, [#allocation6], 256, 256, 16
    $region13: #{qam_forward.1} parent=1 // pred_fallthru
      _
    // Predicated region
    $region14: #{qam_forward.1} parent=1 // pred_check
      _
    $region15: #{qam_forward.1} parent=1 // pred_check_branch
      %46 = sbr.rel (0) target = $region17
    $region16: #{qam_forward.1} parent=1 // pred_region
      %s48 = ssub.s32 64, 64
      %49 = vsyncadd [#allocation9], %s48
      %s51 = sshll.u32 [#allocation8], 4
      %s52 = int_to_ptr.vmem [resolvable:$true] %s51
      %54 = dma.hbm_to_vmem [thread:$0]  %s3, 64, %s52, [#allocation9]
    $region17: #{qam_forward.1} parent=1 // pred_fallthru
      _
    // Predicated region
    $region18: #{qam_forward.1} parent=1 // pred_check
      _
    $region19: #{qam_forward.1} parent=1 // pred_check_branch
      %56 = sbr.rel (0) target = $region21
    $region20: #{qam_forward.1} parent=1 // pred_region
      %57 = dma.done [#allocation3], 512
    $region21: #{qam_forward.1} parent=1 // pred_fallthru
      _
    // Predicated region
    $region22: #{qam_forward.1} parent=1 // pred_check
      _
    $region23: #{qam_forward.1} parent=1 // pred_check_branch
      %59 = sbr.rel (0) target = $region25
    $region24: #{qam_forward.1} parent=1 // pred_region
      %60 = dma.done [#allocation6], 1408
    $region25: #{qam_forward.1} parent=1 // pred_fallthru
      _
    // Predicated region
    $region26: #{qam_forward.1} parent=1 // pred_check
      _
    $region27: #{qam_forward.1} parent=1 // pred_check_branch
      %62 = sbr.rel (0) target = $region29
    $region28: #{qam_forward.1} parent=1 // pred_region
      %63 = dma.done [#allocation6], 45056
    $region29: #{qam_forward.1} parent=1 // pred_fallthru
      _
    // Predicated region
    $region30: #{qam_forward.1} parent=1 // pred_check
      _
    $region31: #{qam_forward.1} parent=1 // pred_check_branch
      %65 = sbr.rel (0) target = $region33
    $region32: #{qam_forward.1} parent=1 // pred_region
      %66 = dma.done [#allocation9], 64
    $region33: #{qam_forward.1} parent=1 // pred_fallthru
      _
    %v68 = vld [vmem:[#allocation5] sm:$0xff]
    %v69 = vld [vmem:[#allocation5 + $0x8] sm:$0xff]
    %v70 = vld [vmem:[#allocation5 + $0x10] sm:$0xff]
    %v71 = vld [vmem:[#allocation5 + $0x18] sm:$0xff]
    %v72 = vld [vmem:[#allocation5 + $0x20] sm:$0xff]
    %v73 = vld [vmem:[#allocation5 + $0x28] sm:$0xff]
    %v74 = vld [vmem:[#allocation5 + $0x30] sm:$0xff]
    %v75 = vld [vmem:[#allocation5 + $0x38] sm:$0xff]
    %v76 = vld [vmem:[#allocation5 + $0x40] sm:$0xff]
    %v77 = vld [vmem:[#allocation5 + $0x48] sm:$0xff]
    %v78 = vld [vmem:[#allocation5 + $0x50] sm:$0xff]
    %v79 = vpack.c.bf16 %v68, %v68
    %v80 = vpack.c.bf16 %v69, %v69
    %v81 = vpack.c.bf16 %v70, %v70
    %v82 = vpack.c.bf16 %v71, %v71
    %v83 = vpack.c.bf16 %v72, %v72
    %v84 = vpack.c.bf16 %v73, %v73
    %v85 = vpack.c.bf16 %v74, %v74
    %v86 = vpack.c.bf16 %v75, %v75
    %v87 = vpack.c.bf16 %v76, %v76
    %v88 = vpack.c.bf16 %v77, %v77
    %v89 = vpack.c.bf16 %v78, %v78
    %v90 = vld [vmem:[#allocation7] sm:$0xff]
    %v91 = vld [vmem:[#allocation7 + $0x8] sm:$0xff]
    %v92 = vld [vmem:[#allocation7 + $0x10] sm:$0xff]
    %v93 = vld [vmem:[#allocation7 + $0x18] sm:$0xff]
    %v94 = vld [vmem:[#allocation7 + $0x20] sm:$0xff]
    %v95 = vld [vmem:[#allocation7 + $0x28] sm:$0xff]
    %v96 = vld [vmem:[#allocation7 + $0x30] sm:$0xff]
    %v97 = vld [vmem:[#allocation7 + $0x38] sm:$0xff]
    %v98 = vld [vmem:[#allocation7 + $0x40] sm:$0xff]
    %v99 = vld [vmem:[#allocation7 + $0x48] sm:$0xff]
    %v100 = vld [vmem:[#allocation7 + $0x50] sm:$0xff]
    %v101 = vld [vmem:[#allocation7 + $0x58] sm:$0xff]
    %v102 = vld [vmem:[#allocation7 + $0x60] sm:$0xff]
    %v103 = vld [vmem:[#allocation7 + $0x68] sm:$0xff]
    %v104 = vld [vmem:[#allocation7 + $0x70] sm:$0xff]
    %v105 = vld [vmem:[#allocation7 + $0x78] sm:$0xff]
    %v106 = vld [vmem:[#allocation7 + $0x80] sm:$0xff]
    %v107 = vld [vmem:[#allocation7 + $0x88] sm:$0xff]
    %v108 = vld [vmem:[#allocation7 + $0x90] sm:$0xff]
    %v109 = vld [vmem:[#allocation7 + $0x98] sm:$0xff]
    %v110 = vld [vmem:[#allocation7 + $0xa0] sm:$0xff]
    %v111 = vld [vmem:[#allocation7 + $0xa8] sm:$0xff]
    %v112 = vld [vmem:[#allocation7 + $0xb0] sm:$0xff]
    %v113 = vld [vmem:[#allocation7 + $0xb8] sm:$0xff]
    %v114 = vld [vmem:[#allocation7 + $0xc0] sm:$0xff]
    %v115 = vld [vmem:[#allocation7 + $0xc8] sm:$0xff]
    %v116 = vld [vmem:[#allocation7 + $0xd0] sm:$0xff]
    %v117 = vld [vmem:[#allocation7 + $0xd8] sm:$0xff]
    %v118 = vld [vmem:[#allocation7 + $0xe0] sm:$0xff]
    %v119 = vld [vmem:[#allocation7 + $0xe8] sm:$0xff]
    %v120 = vld [vmem:[#allocation7 + $0xf0] sm:$0xff]
    %v121 = vld [vmem:[#allocation7 + $0xf8] sm:$0xff]
    %v122 = vld [vmem:[#allocation7 + $0x100] sm:$0xff]
    %v123 = vld [vmem:[#allocation7 + $0x108] sm:$0xff]
    %v124 = vld [vmem:[#allocation7 + $0x110] sm:$0xff]
    %v125 = vld [vmem:[#allocation7 + $0x118] sm:$0xff]
    %v126 = vld [vmem:[#allocation7 + $0x120] sm:$0xff]
    %v127 = vld [vmem:[#allocation7 + $0x128] sm:$0xff]
    %v128 = vld [vmem:[#allocation7 + $0x130] sm:$0xff]
    %v129 = vld [vmem:[#allocation7 + $0x138] sm:$0xff]
    %v130 = vld [vmem:[#allocation7 + $0x140] sm:$0xff]
    %v131 = vld [vmem:[#allocation7 + $0x148] sm:$0xff]
    %v132 = vld [vmem:[#allocation7 + $0x150] sm:$0xff]
    %v133 = vld [vmem:[#allocation7 + $0x158] sm:$0xff]
    %v134 = vld [vmem:[#allocation7 + $0x160] sm:$0xff]
    %v135 = vld [vmem:[#allocation7 + $0x168] sm:$0xff]
    %v136 = vld [vmem:[#allocation7 + $0x170] sm:$0xff]
    %v137 = vld [vmem:[#allocation7 + $0x178] sm:$0xff]
    %v138 = vld [vmem:[#allocation7 + $0x180] sm:$0xff]
    %v139 = vld [vmem:[#allocation7 + $0x188] sm:$0xff]
    %v140 = vld [vmem:[#allocation7 + $0x190] sm:$0xff]
    %v141 = vld [vmem:[#allocation7 + $0x198] sm:$0xff]
    %v142 = vld [vmem:[#allocation7 + $0x1a0] sm:$0xff]
    %v143 = vld [vmem:[#allocation7 + $0x1a8] sm:$0xff]
    %v144 = vld [vmem:[#allocation7 + $0x1b0] sm:$0xff]
    %v145 = vld [vmem:[#allocation7 + $0x1b8] sm:$0xff]
    %v146 = vld [vmem:[#allocation7 + $0x1c0] sm:$0xff]
    %v147 = vld [vmem:[#allocation7 + $0x1c8] sm:$0xff]
    %v148 = vld [vmem:[#allocation7 + $0x1d0] sm:$0xff]
    %v149 = vld [vmem:[#allocation7 + $0x1d8] sm:$0xff]
    %v150 = vld [vmem:[#allocation7 + $0x1e0] sm:$0xff]
    %v151 = vld [vmem:[#allocation7 + $0x1e8] sm:$0xff]
    %v152 = vld [vmem:[#allocation7 + $0x1f0] sm:$0xff]
    %v153 = vld [vmem:[#allocation7 + $0x1f8] sm:$0xff]
    %v154 = vld [vmem:[#allocation7 + $0x200] sm:$0xff]
    %v155 = vld [vmem:[#allocation7 + $0x208] sm:$0xff]
    %v156 = vld [vmem:[#allocation7 + $0x210] sm:$0xff]
    %v157 = vld [vmem:[#allocation7 + $0x218] sm:$0xff]
    %v158 = vld [vmem:[#allocation7 + $0x220] sm:$0xff]
    %v159 = vld [vmem:[#allocation7 + $0x228] sm:$0xff]
    %v160 = vld [vmem:[#allocation7 + $0x230] sm:$0xff]
    %v161 = vld [vmem:[#allocation7 + $0x238] sm:$0xff]
    %v162 = vld [vmem:[#allocation7 + $0x240] sm:$0xff]
    %v163 = vld [vmem:[#allocation7 + $0x248] sm:$0xff]
    %v164 = vld [vmem:[#allocation7 + $0x250] sm:$0xff]
    %v165 = vld [vmem:[#allocation7 + $0x258] sm:$0xff]
    %v166 = vld [vmem:[#allocation7 + $0x260] sm:$0xff]
    %v167 = vld [vmem:[#allocation7 + $0x268] sm:$0xff]
    %v168 = vld [vmem:[#allocation7 + $0x270] sm:$0xff]
    %v169 = vld [vmem:[#allocation7 + $0x278] sm:$0xff]
    %v170 = vld [vmem:[#allocation7 + $0x280] sm:$0xff]
    %v171 = vld [vmem:[#allocation7 + $0x288] sm:$0xff]
    %v172 = vld [vmem:[#allocation7 + $0x290] sm:$0xff]
    %v173 = vld [vmem:[#allocation7 + $0x298] sm:$0xff]
    %v174 = vld [vmem:[#allocation7 + $0x2a0] sm:$0xff]
    %v175 = vld [vmem:[#allocation7 + $0x2a8] sm:$0xff]
    %v176 = vld [vmem:[#allocation7 + $0x2b0] sm:$0xff]
    %v177 = vld [vmem:[#allocation7 + $0x2b8] sm:$0xff]
    %v178 = vld [vmem:[#allocation7 + $0x2c0] sm:$0xff]
    %v179 = vld [vmem:[#allocation7 + $0x2c8] sm:$0xff]
    %v180 = vld [vmem:[#allocation7 + $0x2d0] sm:$0xff]
    %v181 = vld [vmem:[#allocation7 + $0x2d8] sm:$0xff]
    %v182 = vld [vmem:[#allocation7 + $0x2e0] sm:$0xff]
    %v183 = vld [vmem:[#allocation7 + $0x2e8] sm:$0xff]
    %v184 = vld [vmem:[#allocation7 + $0x2f0] sm:$0xff]
    %v185 = vld [vmem:[#allocation7 + $0x2f8] sm:$0xff]
    %v186 = vld [vmem:[#allocation7 + $0x300] sm:$0xff]
    %v187 = vld [vmem:[#allocation7 + $0x308] sm:$0xff]
    %v188 = vld [vmem:[#allocation7 + $0x310] sm:$0xff]
    %v189 = vld [vmem:[#allocation7 + $0x318] sm:$0xff]
    %v190 = vld [vmem:[#allocation7 + $0x320] sm:$0xff]
    %v191 = vld [vmem:[#allocation7 + $0x328] sm:$0xff]
    %v192 = vld [vmem:[#allocation7 + $0x330] sm:$0xff]
    %v193 = vld [vmem:[#allocation7 + $0x338] sm:$0xff]
    %v194 = vld [vmem:[#allocation7 + $0x340] sm:$0xff]
    %v195 = vld [vmem:[#allocation7 + $0x348] sm:$0xff]
    %v196 = vld [vmem:[#allocation7 + $0x350] sm:$0xff]
    %v197 = vld [vmem:[#allocation7 + $0x358] sm:$0xff]
    %v198 = vld [vmem:[#allocation7 + $0x360] sm:$0xff]
    %v199 = vld [vmem:[#allocation7 + $0x368] sm:$0xff]
    %v200 = vld [vmem:[#allocation7 + $0x370] sm:$0xff]
    %v201 = vld [vmem:[#allocation7 + $0x378] sm:$0xff]
    %v202 = vld [vmem:[#allocation7 + $0x380] sm:$0xff]
    %v203 = vld [vmem:[#allocation7 + $0x388] sm:$0xff]
    %v204 = vld [vmem:[#allocation7 + $0x390] sm:$0xff]
    %v205 = vld [vmem:[#allocation7 + $0x398] sm:$0xff]
    %v206 = vld [vmem:[#allocation7 + $0x3a0] sm:$0xff]
    %v207 = vld [vmem:[#allocation7 + $0x3a8] sm:$0xff]
    %v208 = vld [vmem:[#allocation7 + $0x3b0] sm:$0xff]
    %v209 = vld [vmem:[#allocation7 + $0x3b8] sm:$0xff]
    %v210 = vld [vmem:[#allocation7 + $0x3c0] sm:$0xff]
    %v211 = vld [vmem:[#allocation7 + $0x3c8] sm:$0xff]
    %v212 = vld [vmem:[#allocation7 + $0x3d0] sm:$0xff]
    %v213 = vld [vmem:[#allocation7 + $0x3d8] sm:$0xff]
    %v214 = vld [vmem:[#allocation7 + $0x3e0] sm:$0xff]
    %v215 = vld [vmem:[#allocation7 + $0x3e8] sm:$0xff]
    %v216 = vld [vmem:[#allocation7 + $0x3f0] sm:$0xff]
    %v217 = vld [vmem:[#allocation7 + $0x3f8] sm:$0xff]
    %v218 = vld [vmem:[#allocation7 + $0x400] sm:$0xff]
    %v219 = vld [vmem:[#allocation7 + $0x408] sm:$0xff]
    %v220 = vld [vmem:[#allocation7 + $0x410] sm:$0xff]
    %v221 = vld [vmem:[#allocation7 + $0x418] sm:$0xff]
    %v222 = vld [vmem:[#allocation7 + $0x420] sm:$0xff]
    %v223 = vld [vmem:[#allocation7 + $0x428] sm:$0xff]
    %v224 = vld [vmem:[#allocation7 + $0x430] sm:$0xff]
    %v225 = vld [vmem:[#allocation7 + $0x438] sm:$0xff]
    %v226 = vld [vmem:[#allocation7 + $0x440] sm:$0xff]
    %v227 = vld [vmem:[#allocation7 + $0x448] sm:$0xff]
    %v228 = vld [vmem:[#allocation7 + $0x450] sm:$0xff]
    %v229 = vld [vmem:[#allocation7 + $0x458] sm:$0xff]
    %v230 = vld [vmem:[#allocation7 + $0x460] sm:$0xff]
    %v231 = vld [vmem:[#allocation7 + $0x468] sm:$0xff]
    %v232 = vld [vmem:[#allocation7 + $0x470] sm:$0xff]
    %v233 = vld [vmem:[#allocation7 + $0x478] sm:$0xff]
    %v234 = vld [vmem:[#allocation7 + $0x480] sm:$0xff]
    %v235 = vld [vmem:[#allocation7 + $0x488] sm:$0xff]
    %v236 = vld [vmem:[#allocation7 + $0x490] sm:$0xff]
    %v237 = vld [vmem:[#allocation7 + $0x498] sm:$0xff]
    %v238 = vld [vmem:[#allocation7 + $0x4a0] sm:$0xff]
    %v239 = vld [vmem:[#allocation7 + $0x4a8] sm:$0xff]
    %v240 = vld [vmem:[#allocation7 + $0x4b0] sm:$0xff]
    %v241 = vld [vmem:[#allocation7 + $0x4b8] sm:$0xff]
    %v242 = vld [vmem:[#allocation7 + $0x4c0] sm:$0xff]
    %v243 = vld [vmem:[#allocation7 + $0x4c8] sm:$0xff]
    %v244 = vld [vmem:[#allocation7 + $0x4d0] sm:$0xff]
    %v245 = vld [vmem:[#allocation7 + $0x4d8] sm:$0xff]
    %v246 = vld [vmem:[#allocation7 + $0x4e0] sm:$0xff]
    %v247 = vld [vmem:[#allocation7 + $0x4e8] sm:$0xff]
    %v248 = vld [vmem:[#allocation7 + $0x4f0] sm:$0xff]
    %v249 = vld [vmem:[#allocation7 + $0x4f8] sm:$0xff]
    %v250 = vld [vmem:[#allocation7 + $0x500] sm:$0xff]
    %v251 = vld [vmem:[#allocation7 + $0x508] sm:$0xff]
    %v252 = vld [vmem:[#allocation7 + $0x510] sm:$0xff]
    %v253 = vld [vmem:[#allocation7 + $0x518] sm:$0xff]
    %v254 = vld [vmem:[#allocation7 + $0x520] sm:$0xff]
    %v255 = vld [vmem:[#allocation7 + $0x528] sm:$0xff]
    %v256 = vld [vmem:[#allocation7 + $0x530] sm:$0xff]
    %v257 = vld [vmem:[#allocation7 + $0x538] sm:$0xff]
    %v258 = vld [vmem:[#allocation7 + $0x540] sm:$0xff]
    %v259 = vld [vmem:[#allocation7 + $0x548] sm:$0xff]
    %v260 = vld [vmem:[#allocation7 + $0x550] sm:$0xff]
    %v261 = vld [vmem:[#allocation7 + $0x558] sm:$0xff]
    %v262 = vld [vmem:[#allocation7 + $0x560] sm:$0xff]
    %v263 = vld [vmem:[#allocation7 + $0x568] sm:$0xff]
    %v264 = vld [vmem:[#allocation7 + $0x570] sm:$0xff]
    %v265 = vld [vmem:[#allocation7 + $0x578] sm:$0xff]
    %v266 = vld [vmem:[#allocation7 + $0x580] sm:$0xff]
    %v267 = vld [vmem:[#allocation7 + $0x588] sm:$0xff]
    %v268 = vld [vmem:[#allocation7 + $0x590] sm:$0xff]
    %v269 = vld [vmem:[#allocation7 + $0x598] sm:$0xff]
    %v270 = vld [vmem:[#allocation7 + $0x5a0] sm:$0xff]
    %v271 = vld [vmem:[#allocation7 + $0x5a8] sm:$0xff]
    %v272 = vld [vmem:[#allocation7 + $0x5b0] sm:$0xff]
    %v273 = vld [vmem:[#allocation7 + $0x5b8] sm:$0xff]
    %v274 = vld [vmem:[#allocation7 + $0x5c0] sm:$0xff]
    %v275 = vld [vmem:[#allocation7 + $0x5c8] sm:$0xff]
    %v276 = vld [vmem:[#allocation7 + $0x5d0] sm:$0xff]
    %v277 = vld [vmem:[#allocation7 + $0x5d8] sm:$0xff]
    %v278 = vld [vmem:[#allocation7 + $0x5e0] sm:$0xff]
    %v279 = vld [vmem:[#allocation7 + $0x5e8] sm:$0xff]
    %v280 = vld [vmem:[#allocation7 + $0x5f0] sm:$0xff]
    %v281 = vld [vmem:[#allocation7 + $0x5f8] sm:$0xff]
    %v282 = vld [vmem:[#allocation7 + $0x600] sm:$0xff]
    %v283 = vld [vmem:[#allocation7 + $0x608] sm:$0xff]
    %v284 = vld [vmem:[#allocation7 + $0x610] sm:$0xff]
    %v285 = vld [vmem:[#allocation7 + $0x618] sm:$0xff]
    %v286 = vld [vmem:[#allocation7 + $0x620] sm:$0xff]
    %v287 = vld [vmem:[#allocation7 + $0x628] sm:$0xff]
    %v288 = vld [vmem:[#allocation7 + $0x630] sm:$0xff]
    %v289 = vld [vmem:[#allocation7 + $0x638] sm:$0xff]
    %v290 = vld [vmem:[#allocation7 + $0x640] sm:$0xff]
    %v291 = vld [vmem:[#allocation7 + $0x648] sm:$0xff]
    %v292 = vld [vmem:[#allocation7 + $0x650] sm:$0xff]
    %v293 = vld [vmem:[#allocation7 + $0x658] sm:$0xff]
    %v294 = vld [vmem:[#allocation7 + $0x660] sm:$0xff]
    %v295 = vld [vmem:[#allocation7 + $0x668] sm:$0xff]
    %v296 = vld [vmem:[#allocation7 + $0x670] sm:$0xff]
    %v297 = vld [vmem:[#allocation7 + $0x678] sm:$0xff]
    %v298 = vld [vmem:[#allocation7 + $0x680] sm:$0xff]
    %v299 = vld [vmem:[#allocation7 + $0x688] sm:$0xff]
    %v300 = vld [vmem:[#allocation7 + $0x690] sm:$0xff]
    %v301 = vld [vmem:[#allocation7 + $0x698] sm:$0xff]
    %v302 = vld [vmem:[#allocation7 + $0x6a0] sm:$0xff]
    %v303 = vld [vmem:[#allocation7 + $0x6a8] sm:$0xff]
    %v304 = vld [vmem:[#allocation7 + $0x6b0] sm:$0xff]
    %v305 = vld [vmem:[#allocation7 + $0x6b8] sm:$0xff]
    %v306 = vld [vmem:[#allocation7 + $0x6c0] sm:$0xff]
    %v307 = vld [vmem:[#allocation7 + $0x6c8] sm:$0xff]
    %v308 = vld [vmem:[#allocation7 + $0x6d0] sm:$0xff]
    %v309 = vld [vmem:[#allocation7 + $0x6d8] sm:$0xff]
    %v310 = vld [vmem:[#allocation7 + $0x6e0] sm:$0xff]
    %v311 = vld [vmem:[#allocation7 + $0x6e8] sm:$0xff]
    %v312 = vld [vmem:[#allocation7 + $0x6f0] sm:$0xff]
    %v313 = vld [vmem:[#allocation7 + $0x6f8] sm:$0xff]
    %v314 = vld [vmem:[#allocation7 + $0x700] sm:$0xff]
    %v315 = vld [vmem:[#allocation7 + $0x708] sm:$0xff]
    %v316 = vld [vmem:[#allocation7 + $0x710] sm:$0xff]
    %v317 = vld [vmem:[#allocation7 + $0x718] sm:$0xff]
    %v318 = vld [vmem:[#allocation7 + $0x720] sm:$0xff]
    %v319 = vld [vmem:[#allocation7 + $0x728] sm:$0xff]
    %v320 = vld [vmem:[#allocation7 + $0x730] sm:$0xff]
    %v321 = vld [vmem:[#allocation7 + $0x738] sm:$0xff]
    %v322 = vld [vmem:[#allocation7 + $0x740] sm:$0xff]
    %v323 = vld [vmem:[#allocation7 + $0x748] sm:$0xff]
    %v324 = vld [vmem:[#allocation7 + $0x750] sm:$0xff]
    %v325 = vld [vmem:[#allocation7 + $0x758] sm:$0xff]
    %v326 = vld [vmem:[#allocation7 + $0x760] sm:$0xff]
    %v327 = vld [vmem:[#allocation7 + $0x768] sm:$0xff]
    %v328 = vld [vmem:[#allocation7 + $0x770] sm:$0xff]
    %v329 = vld [vmem:[#allocation7 + $0x778] sm:$0xff]
    %v330 = vld [vmem:[#allocation7 + $0x780] sm:$0xff]
    %v331 = vld [vmem:[#allocation7 + $0x788] sm:$0xff]
    %v332 = vld [vmem:[#allocation7 + $0x790] sm:$0xff]
    %v333 = vld [vmem:[#allocation7 + $0x798] sm:$0xff]
    %v334 = vld [vmem:[#allocation7 + $0x7a0] sm:$0xff]
    %v335 = vld [vmem:[#allocation7 + $0x7a8] sm:$0xff]
    %v336 = vld [vmem:[#allocation7 + $0x7b0] sm:$0xff]
    %v337 = vld [vmem:[#allocation7 + $0x7b8] sm:$0xff]
    %v338 = vld [vmem:[#allocation7 + $0x7c0] sm:$0xff]
    %v339 = vld [vmem:[#allocation7 + $0x7c8] sm:$0xff]
    %v340 = vld [vmem:[#allocation7 + $0x7d0] sm:$0xff]
    %v341 = vld [vmem:[#allocation7 + $0x7d8] sm:$0xff]
    %v342 = vld [vmem:[#allocation7 + $0x7e0] sm:$0xff]
    %v343 = vld [vmem:[#allocation7 + $0x7e8] sm:$0xff]
    %v344 = vld [vmem:[#allocation7 + $0x7f0] sm:$0xff]
    %v345 = vld [vmem:[#allocation7 + $0x7f8] sm:$0xff]
    %v346 = vld [vmem:[#allocation7 + $0x800] sm:$0xff]
    %v347 = vld [vmem:[#allocation7 + $0x808] sm:$0xff]
    %v348 = vld [vmem:[#allocation7 + $0x810] sm:$0xff]
    %v349 = vld [vmem:[#allocation7 + $0x818] sm:$0xff]
    %v350 = vld [vmem:[#allocation7 + $0x820] sm:$0xff]
    %v351 = vld [vmem:[#allocation7 + $0x828] sm:$0xff]
    %v352 = vld [vmem:[#allocation7 + $0x830] sm:$0xff]
    %v353 = vld [vmem:[#allocation7 + $0x838] sm:$0xff]
    %v354 = vld [vmem:[#allocation7 + $0x840] sm:$0xff]
    %v355 = vld [vmem:[#allocation7 + $0x848] sm:$0xff]
    %v356 = vld [vmem:[#allocation7 + $0x850] sm:$0xff]
    %v357 = vld [vmem:[#allocation7 + $0x858] sm:$0xff]
    %v358 = vld [vmem:[#allocation7 + $0x860] sm:$0xff]
    %v359 = vld [vmem:[#allocation7 + $0x868] sm:$0xff]
    %v360 = vld [vmem:[#allocation7 + $0x870] sm:$0xff]
    %v361 = vld [vmem:[#allocation7 + $0x878] sm:$0xff]
    %v362 = vld [vmem:[#allocation7 + $0x880] sm:$0xff]
    %v363 = vld [vmem:[#allocation7 + $0x888] sm:$0xff]
    %v364 = vld [vmem:[#allocation7 + $0x890] sm:$0xff]
    %v365 = vld [vmem:[#allocation7 + $0x898] sm:$0xff]
    %v366 = vld [vmem:[#allocation7 + $0x8a0] sm:$0xff]
    %v367 = vld [vmem:[#allocation7 + $0x8a8] sm:$0xff]
    %v368 = vld [vmem:[#allocation7 + $0x8b0] sm:$0xff]
    %v369 = vld [vmem:[#allocation7 + $0x8b8] sm:$0xff]
    %v370 = vld [vmem:[#allocation7 + $0x8c0] sm:$0xff]
    %v371 = vld [vmem:[#allocation7 + $0x8c8] sm:$0xff]
    %v372 = vld [vmem:[#allocation7 + $0x8d0] sm:$0xff]
    %v373 = vld [vmem:[#allocation7 + $0x8d8] sm:$0xff]
    %v374 = vld [vmem:[#allocation7 + $0x8e0] sm:$0xff]
    %v375 = vld [vmem:[#allocation7 + $0x8e8] sm:$0xff]
    %v376 = vld [vmem:[#allocation7 + $0x8f0] sm:$0xff]
    %v377 = vld [vmem:[#allocation7 + $0x8f8] sm:$0xff]
    %v378 = vld [vmem:[#allocation7 + $0x900] sm:$0xff]
    %v379 = vld [vmem:[#allocation7 + $0x908] sm:$0xff]
    %v380 = vld [vmem:[#allocation7 + $0x910] sm:$0xff]
    %v381 = vld [vmem:[#allocation7 + $0x918] sm:$0xff]
    %v382 = vld [vmem:[#allocation7 + $0x920] sm:$0xff]
    %v383 = vld [vmem:[#allocation7 + $0x928] sm:$0xff]
    %v384 = vld [vmem:[#allocation7 + $0x930] sm:$0xff]
    %v385 = vld [vmem:[#allocation7 + $0x938] sm:$0xff]
    %v386 = vld [vmem:[#allocation7 + $0x940] sm:$0xff]
    %v387 = vld [vmem:[#allocation7 + $0x948] sm:$0xff]
    %v388 = vld [vmem:[#allocation7 + $0x950] sm:$0xff]
    %v389 = vld [vmem:[#allocation7 + $0x958] sm:$0xff]
    %v390 = vld [vmem:[#allocation7 + $0x960] sm:$0xff]
    %v391 = vld [vmem:[#allocation7 + $0x968] sm:$0xff]
    %v392 = vld [vmem:[#allocation7 + $0x970] sm:$0xff]
    %v393 = vld [vmem:[#allocation7 + $0x978] sm:$0xff]
    %v394 = vld [vmem:[#allocation7 + $0x980] sm:$0xff]
    %v395 = vld [vmem:[#allocation7 + $0x988] sm:$0xff]
    %v396 = vld [vmem:[#allocation7 + $0x990] sm:$0xff]
    %v397 = vld [vmem:[#allocation7 + $0x998] sm:$0xff]
    %v398 = vld [vmem:[#allocation7 + $0x9a0] sm:$0xff]
    %v399 = vld [vmem:[#allocation7 + $0x9a8] sm:$0xff]
    %v400 = vld [vmem:[#allocation7 + $0x9b0] sm:$0xff]
    %v401 = vld [vmem:[#allocation7 + $0x9b8] sm:$0xff]
    %v402 = vld [vmem:[#allocation7 + $0x9c0] sm:$0xff]
    %v403 = vld [vmem:[#allocation7 + $0x9c8] sm:$0xff]
    %v404 = vld [vmem:[#allocation7 + $0x9d0] sm:$0xff]
    %v405 = vld [vmem:[#allocation7 + $0x9d8] sm:$0xff]
    %v406 = vld [vmem:[#allocation7 + $0x9e0] sm:$0xff]
    %v407 = vld [vmem:[#allocation7 + $0x9e8] sm:$0xff]
    %v408 = vld [vmem:[#allocation7 + $0x9f0] sm:$0xff]
    %v409 = vld [vmem:[#allocation7 + $0x9f8] sm:$0xff]
    %v410 = vld [vmem:[#allocation7 + $0xa00] sm:$0xff]
    %v411 = vld [vmem:[#allocation7 + $0xa08] sm:$0xff]
    %v412 = vld [vmem:[#allocation7 + $0xa10] sm:$0xff]
    %v413 = vld [vmem:[#allocation7 + $0xa18] sm:$0xff]
    %v414 = vld [vmem:[#allocation7 + $0xa20] sm:$0xff]
    %v415 = vld [vmem:[#allocation7 + $0xa28] sm:$0xff]
    %v416 = vld [vmem:[#allocation7 + $0xa30] sm:$0xff]
    %v417 = vld [vmem:[#allocation7 + $0xa38] sm:$0xff]
    %v418 = vld [vmem:[#allocation7 + $0xa40] sm:$0xff]
    %v419 = vld [vmem:[#allocation7 + $0xa48] sm:$0xff]
    %v420 = vld [vmem:[#allocation7 + $0xa50] sm:$0xff]
    %v421 = vld [vmem:[#allocation7 + $0xa58] sm:$0xff]
    %v422 = vld [vmem:[#allocation7 + $0xa60] sm:$0xff]
    %v423 = vld [vmem:[#allocation7 + $0xa68] sm:$0xff]
    %v424 = vld [vmem:[#allocation7 + $0xa70] sm:$0xff]
    %v425 = vld [vmem:[#allocation7 + $0xa78] sm:$0xff]
    %v426 = vld [vmem:[#allocation7 + $0xa80] sm:$0xff]
    %v427 = vld [vmem:[#allocation7 + $0xa88] sm:$0xff]
    %v428 = vld [vmem:[#allocation7 + $0xa90] sm:$0xff]
    %v429 = vld [vmem:[#allocation7 + $0xa98] sm:$0xff]
    %v430 = vld [vmem:[#allocation7 + $0xaa0] sm:$0xff]
    %v431 = vld [vmem:[#allocation7 + $0xaa8] sm:$0xff]
    %v432 = vld [vmem:[#allocation7 + $0xab0] sm:$0xff]
    %v433 = vld [vmem:[#allocation7 + $0xab8] sm:$0xff]
    %v434 = vld [vmem:[#allocation7 + $0xac0] sm:$0xff]
    %v435 = vld [vmem:[#allocation7 + $0xac8] sm:$0xff]
    %v436 = vld [vmem:[#allocation7 + $0xad0] sm:$0xff]
    %v437 = vld [vmem:[#allocation7 + $0xad8] sm:$0xff]
    %v438 = vld [vmem:[#allocation7 + $0xae0] sm:$0xff]
    %v439 = vld [vmem:[#allocation7 + $0xae8] sm:$0xff]
    %v440 = vld [vmem:[#allocation7 + $0xaf0] sm:$0xff]
    %v441 = vld [vmem:[#allocation7 + $0xaf8] sm:$0xff]
    %v442 = vld [vmem:[#allocation8] sm:$0xf]
    %v444 = vlaneseq
    %v445 = vshrl.u32 %v444, 7
    %v446 = vsub.s32 0, %v445
    %v447 = vrot.slane %v442, %v446
    %v448 = vlaneseq
    %v449 = vshrl.u32 %v448, 7
    %v450 = vsub.s32 1, %v449
    %v451 = vrot.slane %v442, %v450
    %v452 = vlaneseq
    %v453 = vshrl.u32 %v452, 7
    %v454 = vsub.s32 2, %v453
    %v455 = vrot.slane %v442, %v454
    %v456 = vlaneseq
    %v457 = vshrl.u32 %v456, 7
    %v458 = vsub.s32 3, %v457
    %v459 = vrot.slane %v442, %v458
    %v816 = vunpack.c.l.b16 %v90
    %v817 = vunpack.c.h.b16 %v90
    %v818 = vunpack.c.l.b16 %v91
    %v819 = vunpack.c.h.b16 %v91
    %v820 = vunpack.c.l.b16 %v92
    %v821 = vunpack.c.h.b16 %v92
    %v822 = vunpack.c.l.b16 %v93
    %v823 = vunpack.c.h.b16 %v93
    %v824 = vunpack.c.l.b16 %v94
    %v825 = vunpack.c.h.b16 %v94
    %v826 = vunpack.c.l.b16 %v95
    %v827 = vunpack.c.h.b16 %v95
    %v828 = vunpack.c.l.b16 %v96
    %v829 = vunpack.c.h.b16 %v96
    %v830 = vunpack.c.l.b16 %v97
    %v831 = vunpack.c.h.b16 %v97
    %v832 = vunpack.c.l.b16 %v98
    %v833 = vunpack.c.h.b16 %v98
    %v834 = vunpack.c.l.b16 %v99
    %v835 = vunpack.c.h.b16 %v99
    %v836 = vunpack.c.l.b16 %v100
    %v837 = vunpack.c.h.b16 %v100
    %v838 = vunpack.c.l.b16 %v101
    %v839 = vunpack.c.h.b16 %v101
    %v840 = vunpack.c.l.b16 %v102
    %v841 = vunpack.c.h.b16 %v102
    %v842 = vunpack.c.l.b16 %v103
    %v843 = vunpack.c.h.b16 %v103
    %v844 = vunpack.c.l.b16 %v104
    %v845 = vunpack.c.h.b16 %v104
    %v846 = vunpack.c.l.b16 %v105
    %v847 = vunpack.c.h.b16 %v105
    %v848 = vunpack.c.l.b16 %v106
    %v849 = vunpack.c.h.b16 %v106
    %v850 = vunpack.c.l.b16 %v107
    %v851 = vunpack.c.h.b16 %v107
    %v852 = vunpack.c.l.b16 %v108
    %v853 = vunpack.c.h.b16 %v108
    %v854 = vunpack.c.l.b16 %v109
    %v855 = vunpack.c.h.b16 %v109
    %v856 = vunpack.c.l.b16 %v110
    %v857 = vunpack.c.h.b16 %v110
    %v858 = vunpack.c.l.b16 %v111
    %v859 = vunpack.c.h.b16 %v111
    %v860 = vunpack.c.l.b16 %v112
    %v861 = vunpack.c.h.b16 %v112
    %v862 = vunpack.c.l.b16 %v113
    %v863 = vunpack.c.h.b16 %v113
    %v864 = vunpack.c.l.b16 %v114
    %v865 = vunpack.c.h.b16 %v114
    %v866 = vunpack.c.l.b16 %v115
    %v867 = vunpack.c.h.b16 %v115
    %v868 = vunpack.c.l.b16 %v116
    %v869 = vunpack.c.h.b16 %v116
    %v870 = vunpack.c.l.b16 %v117
    %v871 = vunpack.c.h.b16 %v117
    %v872 = vunpack.c.l.b16 %v118
    %v873 = vunpack.c.h.b16 %v118
    %v874 = vunpack.c.l.b16 %v119
    %v875 = vunpack.c.h.b16 %v119
    %v876 = vunpack.c.l.b16 %v120
    %v877 = vunpack.c.h.b16 %v120
    %v878 = vunpack.c.l.b16 %v121
    %v879 = vunpack.c.h.b16 %v121
    %v880 = vunpack.c.l.b16 %v122
    %v881 = vunpack.c.h.b16 %v122
    %v882 = vunpack.c.l.b16 %v123
    %v883 = vunpack.c.h.b16 %v123
    %v884 = vunpack.c.l.b16 %v124
    %v885 = vunpack.c.h.b16 %v124
    %v886 = vunpack.c.l.b16 %v125
    %v887 = vunpack.c.h.b16 %v125
    %v888 = vunpack.c.l.b16 %v126
    %v889 = vunpack.c.h.b16 %v126
    %v890 = vunpack.c.l.b16 %v127
    %v891 = vunpack.c.h.b16 %v127
    %v892 = vunpack.c.l.b16 %v128
    %v893 = vunpack.c.h.b16 %v128
    %v894 = vunpack.c.l.b16 %v129
    %v895 = vunpack.c.h.b16 %v129
    %v896 = vunpack.c.l.b16 %v130
    %v897 = vunpack.c.h.b16 %v130
    %v898 = vunpack.c.l.b16 %v131
    %v899 = vunpack.c.h.b16 %v131
    %v900 = vunpack.c.l.b16 %v132
    %v901 = vunpack.c.h.b16 %v132
    %v902 = vunpack.c.l.b16 %v133
    %v903 = vunpack.c.h.b16 %v133
    %v904 = vunpack.c.l.b16 %v134
    %v905 = vunpack.c.h.b16 %v134
    %v906 = vunpack.c.l.b16 %v135
    %v907 = vunpack.c.h.b16 %v135
    %v908 = vunpack.c.l.b16 %v136
    %v909 = vunpack.c.h.b16 %v136
    %v910 = vunpack.c.l.b16 %v137
    %v911 = vunpack.c.h.b16 %v137
    %v912 = vunpack.c.l.b16 %v138
    %v913 = vunpack.c.h.b16 %v138
    %v914 = vunpack.c.l.b16 %v139
    %v915 = vunpack.c.h.b16 %v139
    %v916 = vunpack.c.l.b16 %v140
    %v917 = vunpack.c.h.b16 %v140
    %v918 = vunpack.c.l.b16 %v141
    %v919 = vunpack.c.h.b16 %v141
    %v920 = vunpack.c.l.b16 %v142
    %v921 = vunpack.c.h.b16 %v142
    %v922 = vunpack.c.l.b16 %v143
    %v923 = vunpack.c.h.b16 %v143
    %v924 = vunpack.c.l.b16 %v144
    %v925 = vunpack.c.h.b16 %v144
    %v926 = vunpack.c.l.b16 %v145
    %v927 = vunpack.c.h.b16 %v145
    %v928 = vunpack.c.l.b16 %v146
    %v929 = vunpack.c.h.b16 %v146
    %v930 = vunpack.c.l.b16 %v147
    %v931 = vunpack.c.h.b16 %v147
    %v932 = vunpack.c.l.b16 %v148
    %v933 = vunpack.c.h.b16 %v148
    %v934 = vunpack.c.l.b16 %v149
    %v935 = vunpack.c.h.b16 %v149
    %v936 = vunpack.c.l.b16 %v150
    %v937 = vunpack.c.h.b16 %v150
    %v938 = vunpack.c.l.b16 %v151
    %v939 = vunpack.c.h.b16 %v151
    %v940 = vunpack.c.l.b16 %v152
    %v941 = vunpack.c.h.b16 %v152
    %v942 = vunpack.c.l.b16 %v153
    %v943 = vunpack.c.h.b16 %v153
    %v944 = vunpack.c.l.b16 %v154
    %v945 = vunpack.c.h.b16 %v154
    %v946 = vunpack.c.l.b16 %v155
    %v947 = vunpack.c.h.b16 %v155
    %v948 = vunpack.c.l.b16 %v156
    %v949 = vunpack.c.h.b16 %v156
    %v950 = vunpack.c.l.b16 %v157
    %v951 = vunpack.c.h.b16 %v157
    %v952 = vunpack.c.l.b16 %v158
    %v953 = vunpack.c.h.b16 %v158
    %v954 = vunpack.c.l.b16 %v159
    %v955 = vunpack.c.h.b16 %v159
    %v956 = vunpack.c.l.b16 %v160
    %v957 = vunpack.c.h.b16 %v160
    %v958 = vunpack.c.l.b16 %v161
    %v959 = vunpack.c.h.b16 %v161
    %v960 = vunpack.c.l.b16 %v162
    %v961 = vunpack.c.h.b16 %v162
    %v962 = vunpack.c.l.b16 %v163
    %v963 = vunpack.c.h.b16 %v163
    %v964 = vunpack.c.l.b16 %v164
    %v965 = vunpack.c.h.b16 %v164
    %v966 = vunpack.c.l.b16 %v165
    %v967 = vunpack.c.h.b16 %v165
    %v968 = vunpack.c.l.b16 %v166
    %v969 = vunpack.c.h.b16 %v166
    %v970 = vunpack.c.l.b16 %v167
    %v971 = vunpack.c.h.b16 %v167
    %v972 = vunpack.c.l.b16 %v168
    %v973 = vunpack.c.h.b16 %v168
    %v974 = vunpack.c.l.b16 %v169
    %v975 = vunpack.c.h.b16 %v169
    %v976 = vunpack.c.l.b16 %v170
    %v977 = vunpack.c.h.b16 %v170
    %v978 = vunpack.c.l.b16 %v171
    %v979 = vunpack.c.h.b16 %v171
    %v980 = vunpack.c.l.b16 %v172
    %v981 = vunpack.c.h.b16 %v172
    %v982 = vunpack.c.l.b16 %v173
    %v983 = vunpack.c.h.b16 %v173
    %v984 = vunpack.c.l.b16 %v174
    %v985 = vunpack.c.h.b16 %v174
    %v986 = vunpack.c.l.b16 %v175
    %v987 = vunpack.c.h.b16 %v175
    %v988 = vunpack.c.l.b16 %v176
    %v989 = vunpack.c.h.b16 %v176
    %v990 = vunpack.c.l.b16 %v177
    %v991 = vunpack.c.h.b16 %v177
    %v992 = vunpack.c.l.b16 %v178
    %v993 = vunpack.c.h.b16 %v178
    %v994 = vunpack.c.l.b16 %v179
    %v995 = vunpack.c.h.b16 %v179
    %v996 = vunpack.c.l.b16 %v180
    %v997 = vunpack.c.h.b16 %v180
    %v998 = vunpack.c.l.b16 %v181
    %v999 = vunpack.c.h.b16 %v181
    %v1000 = vunpack.c.l.b16 %v182
    %v1001 = vunpack.c.h.b16 %v182
    %v1002 = vunpack.c.l.b16 %v183
    %v1003 = vunpack.c.h.b16 %v183
    %v1004 = vunpack.c.l.b16 %v184
    %v1005 = vunpack.c.h.b16 %v184
    %v1006 = vunpack.c.l.b16 %v185
    %v1007 = vunpack.c.h.b16 %v185
    %v1008 = vunpack.c.l.b16 %v186
    %v1009 = vunpack.c.h.b16 %v186
    %v1010 = vunpack.c.l.b16 %v187
    %v1011 = vunpack.c.h.b16 %v187
    %v1012 = vunpack.c.l.b16 %v188
    %v1013 = vunpack.c.h.b16 %v188
    %v1014 = vunpack.c.l.b16 %v189
    %v1015 = vunpack.c.h.b16 %v189
    %v1016 = vunpack.c.l.b16 %v190
    %v1017 = vunpack.c.h.b16 %v190
    %v1018 = vunpack.c.l.b16 %v191
    %v1019 = vunpack.c.h.b16 %v191
    %v1020 = vunpack.c.l.b16 %v192
    %v1021 = vunpack.c.h.b16 %v192
    %v1022 = vunpack.c.l.b16 %v193
    %v1023 = vunpack.c.h.b16 %v193
    %v1024 = vunpack.c.l.b16 %v194
    %v1025 = vunpack.c.h.b16 %v194
    %v1026 = vunpack.c.l.b16 %v195
    %v1027 = vunpack.c.h.b16 %v195
    %v1028 = vunpack.c.l.b16 %v196
    %v1029 = vunpack.c.h.b16 %v196
    %v1030 = vunpack.c.l.b16 %v197
    %v1031 = vunpack.c.h.b16 %v197
    %v1032 = vunpack.c.l.b16 %v198
    %v1033 = vunpack.c.h.b16 %v198
    %v1034 = vunpack.c.l.b16 %v199
    %v1035 = vunpack.c.h.b16 %v199
    %v1036 = vunpack.c.l.b16 %v200
    %v1037 = vunpack.c.h.b16 %v200
    %v1038 = vunpack.c.l.b16 %v201
    %v1039 = vunpack.c.h.b16 %v201
    %v1040 = vunpack.c.l.b16 %v202
    %v1041 = vunpack.c.h.b16 %v202
    %v1042 = vunpack.c.l.b16 %v203
    %v1043 = vunpack.c.h.b16 %v203
    %v1044 = vunpack.c.l.b16 %v204
    %v1045 = vunpack.c.h.b16 %v204
    %v1046 = vunpack.c.l.b16 %v205
    %v1047 = vunpack.c.h.b16 %v205
    %v1048 = vunpack.c.l.b16 %v206
    %v1049 = vunpack.c.h.b16 %v206
    %v1050 = vunpack.c.l.b16 %v207
    %v1051 = vunpack.c.h.b16 %v207
    %v1052 = vunpack.c.l.b16 %v208
    %v1053 = vunpack.c.h.b16 %v208
    %v1054 = vunpack.c.l.b16 %v209
    %v1055 = vunpack.c.h.b16 %v209
    %v1056 = vunpack.c.l.b16 %v210
    %v1057 = vunpack.c.h.b16 %v210
    %v1058 = vunpack.c.l.b16 %v211
    %v1059 = vunpack.c.h.b16 %v211
    %v1060 = vunpack.c.l.b16 %v212
    %v1061 = vunpack.c.h.b16 %v212
    %v1062 = vunpack.c.l.b16 %v213
    %v1063 = vunpack.c.h.b16 %v213
    %v1064 = vunpack.c.l.b16 %v214
    %v1065 = vunpack.c.h.b16 %v214
    %v1066 = vunpack.c.l.b16 %v215
    %v1067 = vunpack.c.h.b16 %v215
    %v1068 = vunpack.c.l.b16 %v216
    %v1069 = vunpack.c.h.b16 %v216
    %v1070 = vunpack.c.l.b16 %v217
    %v1071 = vunpack.c.h.b16 %v217
    %v1072 = vunpack.c.l.b16 %v218
    %v1073 = vunpack.c.h.b16 %v218
    %v1074 = vunpack.c.l.b16 %v219
    %v1075 = vunpack.c.h.b16 %v219
    %v1076 = vunpack.c.l.b16 %v220
    %v1077 = vunpack.c.h.b16 %v220
    %v1078 = vunpack.c.l.b16 %v221
    %v1079 = vunpack.c.h.b16 %v221
    %v1080 = vunpack.c.l.b16 %v222
    %v1081 = vunpack.c.h.b16 %v222
    %v1082 = vunpack.c.l.b16 %v223
    %v1083 = vunpack.c.h.b16 %v223
    %v1084 = vunpack.c.l.b16 %v224
    %v1085 = vunpack.c.h.b16 %v224
    %v1086 = vunpack.c.l.b16 %v225
    %v1087 = vunpack.c.h.b16 %v225
    %v1088 = vunpack.c.l.b16 %v226
    %v1089 = vunpack.c.h.b16 %v226
    %v1090 = vunpack.c.l.b16 %v227
    %v1091 = vunpack.c.h.b16 %v227
    %v1092 = vunpack.c.l.b16 %v228
    %v1093 = vunpack.c.h.b16 %v228
    %v1094 = vunpack.c.l.b16 %v229
    %v1095 = vunpack.c.h.b16 %v229
    %v1096 = vunpack.c.l.b16 %v230
    %v1097 = vunpack.c.h.b16 %v230
    %v1098 = vunpack.c.l.b16 %v231
    %v1099 = vunpack.c.h.b16 %v231
    %v1100 = vunpack.c.l.b16 %v232
    %v1101 = vunpack.c.h.b16 %v232
    %v1102 = vunpack.c.l.b16 %v233
    %v1103 = vunpack.c.h.b16 %v233
    %v1104 = vunpack.c.l.b16 %v234
    %v1105 = vunpack.c.h.b16 %v234
    %v1106 = vunpack.c.l.b16 %v235
    %v1107 = vunpack.c.h.b16 %v235
    %v1108 = vunpack.c.l.b16 %v236
    %v1109 = vunpack.c.h.b16 %v236
    %v1110 = vunpack.c.l.b16 %v237
    %v1111 = vunpack.c.h.b16 %v237
    %v1112 = vunpack.c.l.b16 %v238
    %v1113 = vunpack.c.h.b16 %v238
    %v1114 = vunpack.c.l.b16 %v239
    %v1115 = vunpack.c.h.b16 %v239
    %v1116 = vunpack.c.l.b16 %v240
    %v1117 = vunpack.c.h.b16 %v240
    %v1118 = vunpack.c.l.b16 %v241
    %v1119 = vunpack.c.h.b16 %v241
    %v1120 = vunpack.c.l.b16 %v242
    %v1121 = vunpack.c.h.b16 %v242
    %v1122 = vunpack.c.l.b16 %v243
    %v1123 = vunpack.c.h.b16 %v243
    %v1124 = vunpack.c.l.b16 %v244
    %v1125 = vunpack.c.h.b16 %v244
    %v1126 = vunpack.c.l.b16 %v245
    %v1127 = vunpack.c.h.b16 %v245
    %v1128 = vunpack.c.l.b16 %v246
    %v1129 = vunpack.c.h.b16 %v246
    %v1130 = vunpack.c.l.b16 %v247
    %v1131 = vunpack.c.h.b16 %v247
    %v1132 = vunpack.c.l.b16 %v248
    %v1133 = vunpack.c.h.b16 %v248
    %v1134 = vunpack.c.l.b16 %v249
    %v1135 = vunpack.c.h.b16 %v249
    %v1136 = vunpack.c.l.b16 %v250
    %v1137 = vunpack.c.h.b16 %v250
    %v1138 = vunpack.c.l.b16 %v251
    %v1139 = vunpack.c.h.b16 %v251
    %v1140 = vunpack.c.l.b16 %v252
    %v1141 = vunpack.c.h.b16 %v252
    %v1142 = vunpack.c.l.b16 %v253
    %v1143 = vunpack.c.h.b16 %v253
    %v1144 = vunpack.c.l.b16 %v254
    %v1145 = vunpack.c.h.b16 %v254
    %v1146 = vunpack.c.l.b16 %v255
    %v1147 = vunpack.c.h.b16 %v255
    %v1148 = vunpack.c.l.b16 %v256
    %v1149 = vunpack.c.h.b16 %v256
    %v1150 = vunpack.c.l.b16 %v257
    %v1151 = vunpack.c.h.b16 %v257
    %v1152 = vunpack.c.l.b16 %v258
    %v1153 = vunpack.c.h.b16 %v258
    %v1154 = vunpack.c.l.b16 %v259
    %v1155 = vunpack.c.h.b16 %v259
    %v1156 = vunpack.c.l.b16 %v260
    %v1157 = vunpack.c.h.b16 %v260
    %v1158 = vunpack.c.l.b16 %v261
    %v1159 = vunpack.c.h.b16 %v261
    %v1160 = vunpack.c.l.b16 %v262
    %v1161 = vunpack.c.h.b16 %v262
    %v1162 = vunpack.c.l.b16 %v263
    %v1163 = vunpack.c.h.b16 %v263
    %v1164 = vunpack.c.l.b16 %v264
    %v1165 = vunpack.c.h.b16 %v264
    %v1166 = vunpack.c.l.b16 %v265
    %v1167 = vunpack.c.h.b16 %v265
    %v1168 = vunpack.c.l.b16 %v266
    %v1169 = vunpack.c.h.b16 %v266
    %v1170 = vunpack.c.l.b16 %v267
    %v1171 = vunpack.c.h.b16 %v267
    %v1172 = vunpack.c.l.b16 %v268
    %v1173 = vunpack.c.h.b16 %v268
    %v1174 = vunpack.c.l.b16 %v269
    %v1175 = vunpack.c.h.b16 %v269
    %v1176 = vunpack.c.l.b16 %v270
    %v1177 = vunpack.c.h.b16 %v270
    %v1178 = vunpack.c.l.b16 %v271
    %v1179 = vunpack.c.h.b16 %v271
    %v1180 = vunpack.c.l.b16 %v272
    %v1181 = vunpack.c.h.b16 %v272
    %v1182 = vunpack.c.l.b16 %v273
    %v1183 = vunpack.c.h.b16 %v273
    %v1184 = vunpack.c.l.b16 %v274
    %v1185 = vunpack.c.h.b16 %v274
    %v1186 = vunpack.c.l.b16 %v275
    %v1187 = vunpack.c.h.b16 %v275
    %v1188 = vunpack.c.l.b16 %v276
    %v1189 = vunpack.c.h.b16 %v276
    %v1190 = vunpack.c.l.b16 %v277
    %v1191 = vunpack.c.h.b16 %v277
    %v1192 = vunpack.c.l.b16 %v278
    %v1193 = vunpack.c.h.b16 %v278
    %v1194 = vunpack.c.l.b16 %v279
    %v1195 = vunpack.c.h.b16 %v279
    %v1196 = vunpack.c.l.b16 %v280
    %v1197 = vunpack.c.h.b16 %v280
    %v1198 = vunpack.c.l.b16 %v281
    %v1199 = vunpack.c.h.b16 %v281
    %v1200 = vunpack.c.l.b16 %v282
    %v1201 = vunpack.c.h.b16 %v282
    %v1202 = vunpack.c.l.b16 %v283
    %v1203 = vunpack.c.h.b16 %v283
    %v1204 = vunpack.c.l.b16 %v284
    %v1205 = vunpack.c.h.b16 %v284
    %v1206 = vunpack.c.l.b16 %v285
    %v1207 = vunpack.c.h.b16 %v285
    %v1208 = vunpack.c.l.b16 %v286
    %v1209 = vunpack.c.h.b16 %v286
    %v1210 = vunpack.c.l.b16 %v287
    %v1211 = vunpack.c.h.b16 %v287
    %v1212 = vunpack.c.l.b16 %v288
    %v1213 = vunpack.c.h.b16 %v288
    %v1214 = vunpack.c.l.b16 %v289
    %v1215 = vunpack.c.h.b16 %v289
    %v1216 = vunpack.c.l.b16 %v290
    %v1217 = vunpack.c.h.b16 %v290
    %v1218 = vunpack.c.l.b16 %v291
    %v1219 = vunpack.c.h.b16 %v291
    %v1220 = vunpack.c.l.b16 %v292
    %v1221 = vunpack.c.h.b16 %v292
    %v1222 = vunpack.c.l.b16 %v293
    %v1223 = vunpack.c.h.b16 %v293
    %v1224 = vunpack.c.l.b16 %v294
    %v1225 = vunpack.c.h.b16 %v294
    %v1226 = vunpack.c.l.b16 %v295
    %v1227 = vunpack.c.h.b16 %v295
    %v1228 = vunpack.c.l.b16 %v296
    %v1229 = vunpack.c.h.b16 %v296
    %v1230 = vunpack.c.l.b16 %v297
    %v1231 = vunpack.c.h.b16 %v297
    %v1232 = vunpack.c.l.b16 %v298
    %v1233 = vunpack.c.h.b16 %v298
    %v1234 = vunpack.c.l.b16 %v299
    %v1235 = vunpack.c.h.b16 %v299
    %v1236 = vunpack.c.l.b16 %v300
    %v1237 = vunpack.c.h.b16 %v300
    %v1238 = vunpack.c.l.b16 %v301
    %v1239 = vunpack.c.h.b16 %v301
    %v1240 = vunpack.c.l.b16 %v302
    %v1241 = vunpack.c.h.b16 %v302
    %v1242 = vunpack.c.l.b16 %v303
    %v1243 = vunpack.c.h.b16 %v303
    %v1244 = vunpack.c.l.b16 %v304
    %v1245 = vunpack.c.h.b16 %v304
    %v1246 = vunpack.c.l.b16 %v305
    %v1247 = vunpack.c.h.b16 %v305
    %v1248 = vunpack.c.l.b16 %v306
    %v1249 = vunpack.c.h.b16 %v306
    %v1250 = vunpack.c.l.b16 %v307
    %v1251 = vunpack.c.h.b16 %v307
    %v1252 = vunpack.c.l.b16 %v308
    %v1253 = vunpack.c.h.b16 %v308
    %v1254 = vunpack.c.l.b16 %v309
    %v1255 = vunpack.c.h.b16 %v309
    %v1256 = vunpack.c.l.b16 %v310
    %v1257 = vunpack.c.h.b16 %v310
    %v1258 = vunpack.c.l.b16 %v311
    %v1259 = vunpack.c.h.b16 %v311
    %v1260 = vunpack.c.l.b16 %v312
    %v1261 = vunpack.c.h.b16 %v312
    %v1262 = vunpack.c.l.b16 %v313
    %v1263 = vunpack.c.h.b16 %v313
    %v1264 = vunpack.c.l.b16 %v314
    %v1265 = vunpack.c.h.b16 %v314
    %v1266 = vunpack.c.l.b16 %v315
    %v1267 = vunpack.c.h.b16 %v315
    %v1268 = vunpack.c.l.b16 %v316
    %v1269 = vunpack.c.h.b16 %v316
    %v1270 = vunpack.c.l.b16 %v317
    %v1271 = vunpack.c.h.b16 %v317
    %v1272 = vunpack.c.l.b16 %v318
    %v1273 = vunpack.c.h.b16 %v318
    %v1274 = vunpack.c.l.b16 %v319
    %v1275 = vunpack.c.h.b16 %v319
    %v1276 = vunpack.c.l.b16 %v320
    %v1277 = vunpack.c.h.b16 %v320
    %v1278 = vunpack.c.l.b16 %v321
    %v1279 = vunpack.c.h.b16 %v321
    %v1280 = vunpack.c.l.b16 %v322
    %v1281 = vunpack.c.h.b16 %v322
    %v1282 = vunpack.c.l.b16 %v323
    %v1283 = vunpack.c.h.b16 %v323
    %v1284 = vunpack.c.l.b16 %v324
    %v1285 = vunpack.c.h.b16 %v324
    %v1286 = vunpack.c.l.b16 %v325
    %v1287 = vunpack.c.h.b16 %v325
    %v1288 = vunpack.c.l.b16 %v326
    %v1289 = vunpack.c.h.b16 %v326
    %v1290 = vunpack.c.l.b16 %v327
    %v1291 = vunpack.c.h.b16 %v327
    %v1292 = vunpack.c.l.b16 %v328
    %v1293 = vunpack.c.h.b16 %v328
    %v1294 = vunpack.c.l.b16 %v329
    %v1295 = vunpack.c.h.b16 %v329
    %v1296 = vunpack.c.l.b16 %v330
    %v1297 = vunpack.c.h.b16 %v330
    %v1298 = vunpack.c.l.b16 %v331
    %v1299 = vunpack.c.h.b16 %v331
    %v1300 = vunpack.c.l.b16 %v332
    %v1301 = vunpack.c.h.b16 %v332
    %v1302 = vunpack.c.l.b16 %v333
    %v1303 = vunpack.c.h.b16 %v333
    %v1304 = vunpack.c.l.b16 %v334
    %v1305 = vunpack.c.h.b16 %v334
    %v1306 = vunpack.c.l.b16 %v335
    %v1307 = vunpack.c.h.b16 %v335
    %v1308 = vunpack.c.l.b16 %v336
    %v1309 = vunpack.c.h.b16 %v336
    %v1310 = vunpack.c.l.b16 %v337
    %v1311 = vunpack.c.h.b16 %v337
    %v1312 = vunpack.c.l.b16 %v338
    %v1313 = vunpack.c.h.b16 %v338
    %v1314 = vunpack.c.l.b16 %v339
    %v1315 = vunpack.c.h.b16 %v339
    %v1316 = vunpack.c.l.b16 %v340
    %v1317 = vunpack.c.h.b16 %v340
    %v1318 = vunpack.c.l.b16 %v341
    %v1319 = vunpack.c.h.b16 %v341
    %v1320 = vunpack.c.l.b16 %v342
    %v1321 = vunpack.c.h.b16 %v342
    %v1322 = vunpack.c.l.b16 %v343
    %v1323 = vunpack.c.h.b16 %v343
    %v1324 = vunpack.c.l.b16 %v344
    %v1325 = vunpack.c.h.b16 %v344
    %v1326 = vunpack.c.l.b16 %v345
    %v1327 = vunpack.c.h.b16 %v345
    %v1328 = vunpack.c.l.b16 %v346
    %v1329 = vunpack.c.h.b16 %v346
    %v1330 = vunpack.c.l.b16 %v347
    %v1331 = vunpack.c.h.b16 %v347
    %v1332 = vunpack.c.l.b16 %v348
    %v1333 = vunpack.c.h.b16 %v348
    %v1334 = vunpack.c.l.b16 %v349
    %v1335 = vunpack.c.h.b16 %v349
    %v1336 = vunpack.c.l.b16 %v350
    %v1337 = vunpack.c.h.b16 %v350
    %v1338 = vunpack.c.l.b16 %v351
    %v1339 = vunpack.c.h.b16 %v351
    %v1340 = vunpack.c.l.b16 %v352
    %v1341 = vunpack.c.h.b16 %v352
    %v1342 = vunpack.c.l.b16 %v353
    %v1343 = vunpack.c.h.b16 %v353
    %v1344 = vunpack.c.l.b16 %v354
    %v1345 = vunpack.c.h.b16 %v354
    %v1346 = vunpack.c.l.b16 %v355
    %v1347 = vunpack.c.h.b16 %v355
    %v1348 = vunpack.c.l.b16 %v356
    %v1349 = vunpack.c.h.b16 %v356
    %v1350 = vunpack.c.l.b16 %v357
    %v1351 = vunpack.c.h.b16 %v357
    %v1352 = vunpack.c.l.b16 %v358
    %v1353 = vunpack.c.h.b16 %v358
    %v1354 = vunpack.c.l.b16 %v359
    %v1355 = vunpack.c.h.b16 %v359
    %v1356 = vunpack.c.l.b16 %v360
    %v1357 = vunpack.c.h.b16 %v360
    %v1358 = vunpack.c.l.b16 %v361
    %v1359 = vunpack.c.h.b16 %v361
    %v1360 = vunpack.c.l.b16 %v362
    %v1361 = vunpack.c.h.b16 %v362
    %v1362 = vunpack.c.l.b16 %v363
    %v1363 = vunpack.c.h.b16 %v363
    %v1364 = vunpack.c.l.b16 %v364
    %v1365 = vunpack.c.h.b16 %v364
    %v1366 = vunpack.c.l.b16 %v365
    %v1367 = vunpack.c.h.b16 %v365
    %v1368 = vunpack.c.l.b16 %v366
    %v1369 = vunpack.c.h.b16 %v366
    %v1370 = vunpack.c.l.b16 %v367
    %v1371 = vunpack.c.h.b16 %v367
    %v1372 = vunpack.c.l.b16 %v368
    %v1373 = vunpack.c.h.b16 %v368
    %v1374 = vunpack.c.l.b16 %v369
    %v1375 = vunpack.c.h.b16 %v369
    %v1376 = vunpack.c.l.b16 %v370
    %v1377 = vunpack.c.h.b16 %v370
    %v1378 = vunpack.c.l.b16 %v371
    %v1379 = vunpack.c.h.b16 %v371
    %v1380 = vunpack.c.l.b16 %v372
    %v1381 = vunpack.c.h.b16 %v372
    %v1382 = vunpack.c.l.b16 %v373
    %v1383 = vunpack.c.h.b16 %v373
    %v1384 = vunpack.c.l.b16 %v374
    %v1385 = vunpack.c.h.b16 %v374
    %v1386 = vunpack.c.l.b16 %v375
    %v1387 = vunpack.c.h.b16 %v375
    %v1388 = vunpack.c.l.b16 %v376
    %v1389 = vunpack.c.h.b16 %v376
    %v1390 = vunpack.c.l.b16 %v377
    %v1391 = vunpack.c.h.b16 %v377
    %v1392 = vunpack.c.l.b16 %v378
    %v1393 = vunpack.c.h.b16 %v378
    %v1394 = vunpack.c.l.b16 %v379
    %v1395 = vunpack.c.h.b16 %v379
    %v1396 = vunpack.c.l.b16 %v380
    %v1397 = vunpack.c.h.b16 %v380
    %v1398 = vunpack.c.l.b16 %v381
    %v1399 = vunpack.c.h.b16 %v381
    %v1400 = vunpack.c.l.b16 %v382
    %v1401 = vunpack.c.h.b16 %v382
    %v1402 = vunpack.c.l.b16 %v383
    %v1403 = vunpack.c.h.b16 %v383
    %v1404 = vunpack.c.l.b16 %v384
    %v1405 = vunpack.c.h.b16 %v384
    %v1406 = vunpack.c.l.b16 %v385
    %v1407 = vunpack.c.h.b16 %v385
    %v1408 = vunpack.c.l.b16 %v386
    %v1409 = vunpack.c.h.b16 %v386
    %v1410 = vunpack.c.l.b16 %v387
    %v1411 = vunpack.c.h.b16 %v387
    %v1412 = vunpack.c.l.b16 %v388
    %v1413 = vunpack.c.h.b16 %v388
    %v1414 = vunpack.c.l.b16 %v389
    %v1415 = vunpack.c.h.b16 %v389
    %v1416 = vunpack.c.l.b16 %v390
    %v1417 = vunpack.c.h.b16 %v390
    %v1418 = vunpack.c.l.b16 %v391
    %v1419 = vunpack.c.h.b16 %v391
    %v1420 = vunpack.c.l.b16 %v392
    %v1421 = vunpack.c.h.b16 %v392
    %v1422 = vunpack.c.l.b16 %v393
    %v1423 = vunpack.c.h.b16 %v393
    %v1424 = vunpack.c.l.b16 %v394
    %v1425 = vunpack.c.h.b16 %v394
    %v1426 = vunpack.c.l.b16 %v395
    %v1427 = vunpack.c.h.b16 %v395
    %v1428 = vunpack.c.l.b16 %v396
    %v1429 = vunpack.c.h.b16 %v396
    %v1430 = vunpack.c.l.b16 %v397
    %v1431 = vunpack.c.h.b16 %v397
    %v1432 = vunpack.c.l.b16 %v398
    %v1433 = vunpack.c.h.b16 %v398
    %v1434 = vunpack.c.l.b16 %v399
    %v1435 = vunpack.c.h.b16 %v399
    %v1436 = vunpack.c.l.b16 %v400
    %v1437 = vunpack.c.h.b16 %v400
    %v1438 = vunpack.c.l.b16 %v401
    %v1439 = vunpack.c.h.b16 %v401
    %v1440 = vunpack.c.l.b16 %v402
    %v1441 = vunpack.c.h.b16 %v402
    %v1442 = vunpack.c.l.b16 %v403
    %v1443 = vunpack.c.h.b16 %v403
    %v1444 = vunpack.c.l.b16 %v404
    %v1445 = vunpack.c.h.b16 %v404
    %v1446 = vunpack.c.l.b16 %v405
    %v1447 = vunpack.c.h.b16 %v405
    %v1448 = vunpack.c.l.b16 %v406
    %v1449 = vunpack.c.h.b16 %v406
    %v1450 = vunpack.c.l.b16 %v407
    %v1451 = vunpack.c.h.b16 %v407
    %v1452 = vunpack.c.l.b16 %v408
    %v1453 = vunpack.c.h.b16 %v408
    %v1454 = vunpack.c.l.b16 %v409
    %v1455 = vunpack.c.h.b16 %v409
    %v1456 = vunpack.c.l.b16 %v410
    %v1457 = vunpack.c.h.b16 %v410
    %v1458 = vunpack.c.l.b16 %v411
    %v1459 = vunpack.c.h.b16 %v411
    %v1460 = vunpack.c.l.b16 %v412
    %v1461 = vunpack.c.h.b16 %v412
    %v1462 = vunpack.c.l.b16 %v413
    %v1463 = vunpack.c.h.b16 %v413
    %v1464 = vunpack.c.l.b16 %v414
    %v1465 = vunpack.c.h.b16 %v414
    %v1466 = vunpack.c.l.b16 %v415
    %v1467 = vunpack.c.h.b16 %v415
    %v1468 = vunpack.c.l.b16 %v416
    %v1469 = vunpack.c.h.b16 %v416
    %v1470 = vunpack.c.l.b16 %v417
    %v1471 = vunpack.c.h.b16 %v417
    %v1472 = vunpack.c.l.b16 %v418
    %v1473 = vunpack.c.h.b16 %v418
    %v1474 = vunpack.c.l.b16 %v419
    %v1475 = vunpack.c.h.b16 %v419
    %v1476 = vunpack.c.l.b16 %v420
    %v1477 = vunpack.c.h.b16 %v420
    %v1478 = vunpack.c.l.b16 %v421
    %v1479 = vunpack.c.h.b16 %v421
    %v1480 = vunpack.c.l.b16 %v422
    %v1481 = vunpack.c.h.b16 %v422
    %v1482 = vunpack.c.l.b16 %v423
    %v1483 = vunpack.c.h.b16 %v423
    %v1484 = vunpack.c.l.b16 %v424
    %v1485 = vunpack.c.h.b16 %v424
    %v1486 = vunpack.c.l.b16 %v425
    %v1487 = vunpack.c.h.b16 %v425
    %v1488 = vunpack.c.l.b16 %v426
    %v1489 = vunpack.c.h.b16 %v426
    %v1490 = vunpack.c.l.b16 %v427
    %v1491 = vunpack.c.h.b16 %v427
    %v1492 = vunpack.c.l.b16 %v428
    %v1493 = vunpack.c.h.b16 %v428
    %v1494 = vunpack.c.l.b16 %v429
    %v1495 = vunpack.c.h.b16 %v429
    %v1496 = vunpack.c.l.b16 %v430
    %v1497 = vunpack.c.h.b16 %v430
    %v1498 = vunpack.c.l.b16 %v431
    %v1499 = vunpack.c.h.b16 %v431
    %v1500 = vunpack.c.l.b16 %v432
    %v1501 = vunpack.c.h.b16 %v432
    %v1502 = vunpack.c.l.b16 %v433
    %v1503 = vunpack.c.h.b16 %v433
    %v1504 = vunpack.c.l.b16 %v434
    %v1505 = vunpack.c.h.b16 %v434
    %v1506 = vunpack.c.l.b16 %v435
    %v1507 = vunpack.c.h.b16 %v435
    %v1508 = vunpack.c.l.b16 %v436
    %v1509 = vunpack.c.h.b16 %v436
    %v1510 = vunpack.c.l.b16 %v437
    %v1511 = vunpack.c.h.b16 %v437
    %v1512 = vunpack.c.l.b16 %v438
    %v1513 = vunpack.c.h.b16 %v438
    %v1514 = vunpack.c.l.b16 %v439
    %v1515 = vunpack.c.h.b16 %v439
    %v1516 = vunpack.c.l.b16 %v440
    %v1517 = vunpack.c.h.b16 %v440
    %v1518 = vunpack.c.l.b16 %v441
    %v1519 = vunpack.c.h.b16 %v441
    %v1520 = vpack.c.b16 %v820, %v816
    %v1521 = vpack.c.b16 %v821, %v817
    %v1522 = vpack.c.b16 %v822, %v818
    %v1523 = vpack.c.b16 %v823, %v819
    %v1524 = vpack.c.b16 %v828, %v824
    %v1525 = vpack.c.b16 %v829, %v825
    %v1526 = vpack.c.b16 %v830, %v826
    %v1527 = vpack.c.b16 %v831, %v827
    %v1528 = vpack.c.b16 %v836, %v832
    %v1529 = vpack.c.b16 %v837, %v833
    %v1530 = vpack.c.b16 %v838, %v834
    %v1531 = vpack.c.b16 %v839, %v835
    %v1532 = vpack.c.b16 %v844, %v840
    %v1533 = vpack.c.b16 %v845, %v841
    %v1534 = vpack.c.b16 %v846, %v842
    %v1535 = vpack.c.b16 %v847, %v843
    %v1536 = vpack.c.b16 %v852, %v848
    %v1537 = vpack.c.b16 %v853, %v849
    %v1538 = vpack.c.b16 %v854, %v850
    %v1539 = vpack.c.b16 %v855, %v851
    %v1540 = vpack.c.b16 %v860, %v856
    %v1541 = vpack.c.b16 %v861, %v857
    %v1542 = vpack.c.b16 %v862, %v858
    %v1543 = vpack.c.b16 %v863, %v859
    %v1544 = vpack.c.b16 %v868, %v864
    %v1545 = vpack.c.b16 %v869, %v865
    %v1546 = vpack.c.b16 %v870, %v866
    %v1547 = vpack.c.b16 %v871, %v867
    %v1548 = vpack.c.b16 %v876, %v872
    %v1549 = vpack.c.b16 %v877, %v873
    %v1550 = vpack.c.b16 %v878, %v874
    %v1551 = vpack.c.b16 %v879, %v875
    %v1552 = vpack.c.b16 %v884, %v880
    %v1553 = vpack.c.b16 %v885, %v881
    %v1554 = vpack.c.b16 %v886, %v882
    %v1555 = vpack.c.b16 %v887, %v883
    %v1556 = vpack.c.b16 %v892, %v888
    %v1557 = vpack.c.b16 %v893, %v889
    %v1558 = vpack.c.b16 %v894, %v890
    %v1559 = vpack.c.b16 %v895, %v891
    %v1560 = vpack.c.b16 %v900, %v896
    %v1561 = vpack.c.b16 %v901, %v897
    %v1562 = vpack.c.b16 %v902, %v898
    %v1563 = vpack.c.b16 %v903, %v899
    %v1564 = vpack.c.b16 %v908, %v904
    %v1565 = vpack.c.b16 %v909, %v905
    %v1566 = vpack.c.b16 %v910, %v906
    %v1567 = vpack.c.b16 %v911, %v907
    %v1568 = vpack.c.b16 %v916, %v912
    %v1569 = vpack.c.b16 %v917, %v913
    %v1570 = vpack.c.b16 %v918, %v914
    %v1571 = vpack.c.b16 %v919, %v915
    %v1572 = vpack.c.b16 %v924, %v920
    %v1573 = vpack.c.b16 %v925, %v921
    %v1574 = vpack.c.b16 %v926, %v922
    %v1575 = vpack.c.b16 %v927, %v923
    %v1576 = vpack.c.b16 %v932, %v928
    %v1577 = vpack.c.b16 %v933, %v929
    %v1578 = vpack.c.b16 %v934, %v930
    %v1579 = vpack.c.b16 %v935, %v931
    %v1580 = vpack.c.b16 %v940, %v936
    %v1581 = vpack.c.b16 %v941, %v937
    %v1582 = vpack.c.b16 %v942, %v938
    %v1583 = vpack.c.b16 %v943, %v939
    %v1584 = vpack.c.b16 %v948, %v944
    %v1585 = vpack.c.b16 %v949, %v945
    %v1586 = vpack.c.b16 %v950, %v946
    %v1587 = vpack.c.b16 %v951, %v947
    %v1588 = vpack.c.b16 %v956, %v952
    %v1589 = vpack.c.b16 %v957, %v953
    %v1590 = vpack.c.b16 %v958, %v954
    %v1591 = vpack.c.b16 %v959, %v955
    %v1592 = vpack.c.b16 %v964, %v960
    %v1593 = vpack.c.b16 %v965, %v961
    %v1594 = vpack.c.b16 %v966, %v962
    %v1595 = vpack.c.b16 %v967, %v963
    %v1596 = vpack.c.b16 %v972, %v968
    %v1597 = vpack.c.b16 %v973, %v969
    %v1598 = vpack.c.b16 %v974, %v970
    %v1599 = vpack.c.b16 %v975, %v971
    %v1600 = vpack.c.b16 %v980, %v976
    %v1601 = vpack.c.b16 %v981, %v977
    %v1602 = vpack.c.b16 %v982, %v978
    %v1603 = vpack.c.b16 %v983, %v979
    %v1604 = vpack.c.b16 %v988, %v984
    %v1605 = vpack.c.b16 %v989, %v985
    %v1606 = vpack.c.b16 %v990, %v986
    %v1607 = vpack.c.b16 %v991, %v987
    %v1608 = vpack.c.b16 %v996, %v992
    %v1609 = vpack.c.b16 %v997, %v993
    %v1610 = vpack.c.b16 %v998, %v994
    %v1611 = vpack.c.b16 %v999, %v995
    %v1612 = vpack.c.b16 %v1004, %v1000
    %v1613 = vpack.c.b16 %v1005, %v1001
    %v1614 = vpack.c.b16 %v1006, %v1002
    %v1615 = vpack.c.b16 %v1007, %v1003
    %v1616 = vpack.c.b16 %v1012, %v1008
    %v1617 = vpack.c.b16 %v1013, %v1009
    %v1618 = vpack.c.b16 %v1014, %v1010
    %v1619 = vpack.c.b16 %v1015, %v1011
    %v1620 = vpack.c.b16 %v1020, %v1016
    %v1621 = vpack.c.b16 %v1021, %v1017
    %v1622 = vpack.c.b16 %v1022, %v1018
    %v1623 = vpack.c.b16 %v1023, %v1019
    %v1624 = vpack.c.b16 %v1028, %v1024
    %v1625 = vpack.c.b16 %v1029, %v1025
    %v1626 = vpack.c.b16 %v1030, %v1026
    %v1627 = vpack.c.b16 %v1031, %v1027
    %v1628 = vpack.c.b16 %v1036, %v1032
    %v1629 = vpack.c.b16 %v1037, %v1033
    %v1630 = vpack.c.b16 %v1038, %v1034
    %v1631 = vpack.c.b16 %v1039, %v1035
    %v1632 = vpack.c.b16 %v1044, %v1040
    %v1633 = vpack.c.b16 %v1045, %v1041
    %v1634 = vpack.c.b16 %v1046, %v1042
    %v1635 = vpack.c.b16 %v1047, %v1043
    %v1636 = vpack.c.b16 %v1052, %v1048
    %v1637 = vpack.c.b16 %v1053, %v1049
    %v1638 = vpack.c.b16 %v1054, %v1050
    %v1639 = vpack.c.b16 %v1055, %v1051
    %v1640 = vpack.c.b16 %v1060, %v1056
    %v1641 = vpack.c.b16 %v1061, %v1057
    %v1642 = vpack.c.b16 %v1062, %v1058
    %v1643 = vpack.c.b16 %v1063, %v1059
    %v1644 = vpack.c.b16 %v1068, %v1064
    %v1645 = vpack.c.b16 %v1069, %v1065
    %v1646 = vpack.c.b16 %v1070, %v1066
    %v1647 = vpack.c.b16 %v1071, %v1067
    %v1648 = vpack.c.b16 %v1076, %v1072
    %v1649 = vpack.c.b16 %v1077, %v1073
    %v1650 = vpack.c.b16 %v1078, %v1074
    %v1651 = vpack.c.b16 %v1079, %v1075
    %v1652 = vpack.c.b16 %v1084, %v1080
    %v1653 = vpack.c.b16 %v1085, %v1081
    %v1654 = vpack.c.b16 %v1086, %v1082
    %v1655 = vpack.c.b16 %v1087, %v1083
    %v1656 = vpack.c.b16 %v1092, %v1088
    %v1657 = vpack.c.b16 %v1093, %v1089
    %v1658 = vpack.c.b16 %v1094, %v1090
    %v1659 = vpack.c.b16 %v1095, %v1091
    %v1660 = vpack.c.b16 %v1100, %v1096
    %v1661 = vpack.c.b16 %v1101, %v1097
    %v1662 = vpack.c.b16 %v1102, %v1098
    %v1663 = vpack.c.b16 %v1103, %v1099
    %v1664 = vpack.c.b16 %v1108, %v1104
    %v1665 = vpack.c.b16 %v1109, %v1105
    %v1666 = vpack.c.b16 %v1110, %v1106
    %v1667 = vpack.c.b16 %v1111, %v1107
    %v1668 = vpack.c.b16 %v1116, %v1112
    %v1669 = vpack.c.b16 %v1117, %v1113
    %v1670 = vpack.c.b16 %v1118, %v1114
    %v1671 = vpack.c.b16 %v1119, %v1115
    %v1672 = vpack.c.b16 %v1124, %v1120
    %v1673 = vpack.c.b16 %v1125, %v1121
    %v1674 = vpack.c.b16 %v1126, %v1122
    %v1675 = vpack.c.b16 %v1127, %v1123
    %v1676 = vpack.c.b16 %v1132, %v1128
    %v1677 = vpack.c.b16 %v1133, %v1129
    %v1678 = vpack.c.b16 %v1134, %v1130
    %v1679 = vpack.c.b16 %v1135, %v1131
    %v1680 = vpack.c.b16 %v1140, %v1136
    %v1681 = vpack.c.b16 %v1141, %v1137
    %v1682 = vpack.c.b16 %v1142, %v1138
    %v1683 = vpack.c.b16 %v1143, %v1139
    %v1684 = vpack.c.b16 %v1148, %v1144
    %v1685 = vpack.c.b16 %v1149, %v1145
    %v1686 = vpack.c.b16 %v1150, %v1146
    %v1687 = vpack.c.b16 %v1151, %v1147
    %v1688 = vpack.c.b16 %v1156, %v1152
    %v1689 = vpack.c.b16 %v1157, %v1153
    %v1690 = vpack.c.b16 %v1158, %v1154
    %v1691 = vpack.c.b16 %v1159, %v1155
    %v1692 = vpack.c.b16 %v1164, %v1160
    %v1693 = vpack.c.b16 %v1165, %v1161
    %v1694 = vpack.c.b16 %v1166, %v1162
    %v1695 = vpack.c.b16 %v1167, %v1163
    %v1696 = vpack.c.b16 %v1172, %v1168
    %v1697 = vpack.c.b16 %v1173, %v1169
    %v1698 = vpack.c.b16 %v1174, %v1170
    %v1699 = vpack.c.b16 %v1175, %v1171
    %v1700 = vpack.c.b16 %v1180, %v1176
    %v1701 = vpack.c.b16 %v1181, %v1177
    %v1702 = vpack.c.b16 %v1182, %v1178
    %v1703 = vpack.c.b16 %v1183, %v1179
    %v1704 = vpack.c.b16 %v1188, %v1184
    %v1705 = vpack.c.b16 %v1189, %v1185
    %v1706 = vpack.c.b16 %v1190, %v1186
    %v1707 = vpack.c.b16 %v1191, %v1187
    %v1708 = vpack.c.b16 %v1196, %v1192
    %v1709 = vpack.c.b16 %v1197, %v1193
    %v1710 = vpack.c.b16 %v1198, %v1194
    %v1711 = vpack.c.b16 %v1199, %v1195
    %v1712 = vpack.c.b16 %v1204, %v1200
    %v1713 = vpack.c.b16 %v1205, %v1201
    %v1714 = vpack.c.b16 %v1206, %v1202
    %v1715 = vpack.c.b16 %v1207, %v1203
    %v1716 = vpack.c.b16 %v1212, %v1208
    %v1717 = vpack.c.b16 %v1213, %v1209
    %v1718 = vpack.c.b16 %v1214, %v1210
    %v1719 = vpack.c.b16 %v1215, %v1211
    %v1720 = vpack.c.b16 %v1220, %v1216
    %v1721 = vpack.c.b16 %v1221, %v1217
    %v1722 = vpack.c.b16 %v1222, %v1218
    %v1723 = vpack.c.b16 %v1223, %v1219
    %v1724 = vpack.c.b16 %v1228, %v1224
    %v1725 = vpack.c.b16 %v1229, %v1225
    %v1726 = vpack.c.b16 %v1230, %v1226
    %v1727 = vpack.c.b16 %v1231, %v1227
    %v1728 = vpack.c.b16 %v1236, %v1232
    %v1729 = vpack.c.b16 %v1237, %v1233
    %v1730 = vpack.c.b16 %v1238, %v1234
    %v1731 = vpack.c.b16 %v1239, %v1235
    %v1732 = vpack.c.b16 %v1244, %v1240
    %v1733 = vpack.c.b16 %v1245, %v1241
    %v1734 = vpack.c.b16 %v1246, %v1242
    %v1735 = vpack.c.b16 %v1247, %v1243
    %v1736 = vpack.c.b16 %v1252, %v1248
    %v1737 = vpack.c.b16 %v1253, %v1249
    %v1738 = vpack.c.b16 %v1254, %v1250
    %v1739 = vpack.c.b16 %v1255, %v1251
    %v1740 = vpack.c.b16 %v1260, %v1256
    %v1741 = vpack.c.b16 %v1261, %v1257
    %v1742 = vpack.c.b16 %v1262, %v1258
    %v1743 = vpack.c.b16 %v1263, %v1259
    %v1744 = vpack.c.b16 %v1268, %v1264
    %v1745 = vpack.c.b16 %v1269, %v1265
    %v1746 = vpack.c.b16 %v1270, %v1266
    %v1747 = vpack.c.b16 %v1271, %v1267
    %v1748 = vpack.c.b16 %v1276, %v1272
    %v1749 = vpack.c.b16 %v1277, %v1273
    %v1750 = vpack.c.b16 %v1278, %v1274
    %v1751 = vpack.c.b16 %v1279, %v1275
    %v1752 = vpack.c.b16 %v1284, %v1280
    %v1753 = vpack.c.b16 %v1285, %v1281
    %v1754 = vpack.c.b16 %v1286, %v1282
    %v1755 = vpack.c.b16 %v1287, %v1283
    %v1756 = vpack.c.b16 %v1292, %v1288
    %v1757 = vpack.c.b16 %v1293, %v1289
    %v1758 = vpack.c.b16 %v1294, %v1290
    %v1759 = vpack.c.b16 %v1295, %v1291
    %v1760 = vpack.c.b16 %v1300, %v1296
    %v1761 = vpack.c.b16 %v1301, %v1297
    %v1762 = vpack.c.b16 %v1302, %v1298
    %v1763 = vpack.c.b16 %v1303, %v1299
    %v1764 = vpack.c.b16 %v1308, %v1304
    %v1765 = vpack.c.b16 %v1309, %v1305
    %v1766 = vpack.c.b16 %v1310, %v1306
    %v1767 = vpack.c.b16 %v1311, %v1307
    %v1768 = vpack.c.b16 %v1316, %v1312
    %v1769 = vpack.c.b16 %v1317, %v1313
    %v1770 = vpack.c.b16 %v1318, %v1314
    %v1771 = vpack.c.b16 %v1319, %v1315
    %v1772 = vpack.c.b16 %v1324, %v1320
    %v1773 = vpack.c.b16 %v1325, %v1321
    %v1774 = vpack.c.b16 %v1326, %v1322
    %v1775 = vpack.c.b16 %v1327, %v1323
    %v1776 = vpack.c.b16 %v1332, %v1328
    %v1777 = vpack.c.b16 %v1333, %v1329
    %v1778 = vpack.c.b16 %v1334, %v1330
    %v1779 = vpack.c.b16 %v1335, %v1331
    %v1780 = vpack.c.b16 %v1340, %v1336
    %v1781 = vpack.c.b16 %v1341, %v1337
    %v1782 = vpack.c.b16 %v1342, %v1338
    %v1783 = vpack.c.b16 %v1343, %v1339
    %v1784 = vpack.c.b16 %v1348, %v1344
    %v1785 = vpack.c.b16 %v1349, %v1345
    %v1786 = vpack.c.b16 %v1350, %v1346
    %v1787 = vpack.c.b16 %v1351, %v1347
    %v1788 = vpack.c.b16 %v1356, %v1352
    %v1789 = vpack.c.b16 %v1357, %v1353
    %v1790 = vpack.c.b16 %v1358, %v1354
    %v1791 = vpack.c.b16 %v1359, %v1355
    %v1792 = vpack.c.b16 %v1364, %v1360
    %v1793 = vpack.c.b16 %v1365, %v1361
    %v1794 = vpack.c.b16 %v1366, %v1362
    %v1795 = vpack.c.b16 %v1367, %v1363
    %v1796 = vpack.c.b16 %v1372, %v1368
    %v1797 = vpack.c.b16 %v1373, %v1369
    %v1798 = vpack.c.b16 %v1374, %v1370
    %v1799 = vpack.c.b16 %v1375, %v1371
    %v1800 = vpack.c.b16 %v1380, %v1376
    %v1801 = vpack.c.b16 %v1381, %v1377
    %v1802 = vpack.c.b16 %v1382, %v1378
    %v1803 = vpack.c.b16 %v1383, %v1379
    %v1804 = vpack.c.b16 %v1388, %v1384
    %v1805 = vpack.c.b16 %v1389, %v1385
    %v1806 = vpack.c.b16 %v1390, %v1386
    %v1807 = vpack.c.b16 %v1391, %v1387
    %v1808 = vpack.c.b16 %v1396, %v1392
    %v1809 = vpack.c.b16 %v1397, %v1393
    %v1810 = vpack.c.b16 %v1398, %v1394
    %v1811 = vpack.c.b16 %v1399, %v1395
    %v1812 = vpack.c.b16 %v1404, %v1400
    %v1813 = vpack.c.b16 %v1405, %v1401
    %v1814 = vpack.c.b16 %v1406, %v1402
    %v1815 = vpack.c.b16 %v1407, %v1403
    %v1816 = vpack.c.b16 %v1412, %v1408
    %v1817 = vpack.c.b16 %v1413, %v1409
    %v1818 = vpack.c.b16 %v1414, %v1410
    %v1819 = vpack.c.b16 %v1415, %v1411
    %v1820 = vpack.c.b16 %v1420, %v1416
    %v1821 = vpack.c.b16 %v1421, %v1417
    %v1822 = vpack.c.b16 %v1422, %v1418
    %v1823 = vpack.c.b16 %v1423, %v1419
    %v1824 = vpack.c.b16 %v1428, %v1424
    %v1825 = vpack.c.b16 %v1429, %v1425
    %v1826 = vpack.c.b16 %v1430, %v1426
    %v1827 = vpack.c.b16 %v1431, %v1427
    %v1828 = vpack.c.b16 %v1436, %v1432
    %v1829 = vpack.c.b16 %v1437, %v1433
    %v1830 = vpack.c.b16 %v1438, %v1434
    %v1831 = vpack.c.b16 %v1439, %v1435
    %v1832 = vpack.c.b16 %v1444, %v1440
    %v1833 = vpack.c.b16 %v1445, %v1441
    %v1834 = vpack.c.b16 %v1446, %v1442
    %v1835 = vpack.c.b16 %v1447, %v1443
    %v1836 = vpack.c.b16 %v1452, %v1448
    %v1837 = vpack.c.b16 %v1453, %v1449
    %v1838 = vpack.c.b16 %v1454, %v1450
    %v1839 = vpack.c.b16 %v1455, %v1451
    %v1840 = vpack.c.b16 %v1460, %v1456
    %v1841 = vpack.c.b16 %v1461, %v1457
    %v1842 = vpack.c.b16 %v1462, %v1458
    %v1843 = vpack.c.b16 %v1463, %v1459
    %v1844 = vpack.c.b16 %v1468, %v1464
    %v1845 = vpack.c.b16 %v1469, %v1465
    %v1846 = vpack.c.b16 %v1470, %v1466
    %v1847 = vpack.c.b16 %v1471, %v1467
    %v1848 = vpack.c.b16 %v1476, %v1472
    %v1849 = vpack.c.b16 %v1477, %v1473
    %v1850 = vpack.c.b16 %v1478, %v1474
    %v1851 = vpack.c.b16 %v1479, %v1475
    %v1852 = vpack.c.b16 %v1484, %v1480
    %v1853 = vpack.c.b16 %v1485, %v1481
    %v1854 = vpack.c.b16 %v1486, %v1482
    %v1855 = vpack.c.b16 %v1487, %v1483
    %v1856 = vpack.c.b16 %v1492, %v1488
    %v1857 = vpack.c.b16 %v1493, %v1489
    %v1858 = vpack.c.b16 %v1494, %v1490
    %v1859 = vpack.c.b16 %v1495, %v1491
    %v1860 = vpack.c.b16 %v1500, %v1496
    %v1861 = vpack.c.b16 %v1501, %v1497
    %v1862 = vpack.c.b16 %v1502, %v1498
    %v1863 = vpack.c.b16 %v1503, %v1499
    %v1864 = vpack.c.b16 %v1508, %v1504
    %v1865 = vpack.c.b16 %v1509, %v1505
    %v1866 = vpack.c.b16 %v1510, %v1506
    %v1867 = vpack.c.b16 %v1511, %v1507
    %v1868 = vpack.c.b16 %v1516, %v1512
    %v1869 = vpack.c.b16 %v1517, %v1513
    %v1870 = vpack.c.b16 %v1518, %v1514
    %v1871 = vpack.c.b16 %v1519, %v1515
    %2224 = vmatprep.subr.bf16.mxu0 %v1521
    %2225 = vmatpush1.bf16.msra.mxu0 %v1520
    %2226 = vmatprep.subr.bf16.mxu0 %v1525
    %2227 = vmatpush1.bf16.msra.mxu0 %v1524
    %2228 = vmatprep.subr.bf16.mxu0 %v1529
    %2229 = vmatpush1.bf16.msra.mxu0 %v1528
    %2230 = vmatprep.subr.bf16.mxu0 %v1533
    %2231 = vmatpush1.bf16.msra.mxu0 %v1532
    %2232 = vmatprep.subr.bf16.mxu0 %v1537
    %2233 = vmatpush1.bf16.msra.mxu0 %v1536
    %2234 = vmatprep.subr.bf16.mxu0 %v1541
    %2235 = vmatpush1.bf16.msra.mxu0 %v1540
    %2236 = vmatprep.subr.bf16.mxu0 %v1545
    %2237 = vmatpush1.bf16.msra.mxu0 %v1544
    %2238 = vmatprep.subr.bf16.mxu0 %v1549
    %2239 = vmatpush1.bf16.msra.mxu0 %v1548
    %2240 = vmatprep.subr.bf16.mxu0 %v1553
    %2241 = vmatpush1.bf16.msra.mxu0 %v1552
    %2242 = vmatprep.subr.bf16.mxu0 %v1557
    %2243 = vmatpush1.bf16.msra.mxu0 %v1556
    %2244 = vmatprep.subr.bf16.mxu0 %v1561
    %2245 = vmatpush1.bf16.msra.mxu0 %v1560
    %2246 = vmatprep.subr.bf16.mxu0 %v1565
    %2247 = vmatpush1.bf16.msra.mxu0 %v1564
    %2248 = vmatprep.subr.bf16.mxu0 %v1569
    %2249 = vmatpush1.bf16.msra.mxu0 %v1568
    %2250 = vmatprep.subr.bf16.mxu0 %v1573
    %2251 = vmatpush1.bf16.msra.mxu0 %v1572
    %2252 = vmatprep.subr.bf16.mxu0 %v1577
    %2253 = vmatpush1.bf16.msra.mxu0 %v1576
    %2254 = vmatprep.subr.bf16.mxu0 %v1581
    %2255 = vmatpush1.bf16.msra.mxu0 %v1580
    %2256 = vmatprep.mubr.bf16.mxu0 %v80
    %2257 = vmatmul.mubr.bf16.gmra.mrb[0].mxu0 %v79
    %v2258 = vpop.f32.mrb[0].mxu0
    %v2259 = vadd.f32 %v447, %v2258
    %v2260 = vpop.f32.mrb[0].mxu0
    %v2261 = vadd.f32 %v451, %v2260
    %v2262 = vpop.f32.mrb[0].mxu0
    %v2263 = vpop.f32.mrb[0].mxu0
    %2264 = vdwg.mxu0
    %2265 = vmatprep.subr.bf16.mxu0 %v1585
    %2266 = vmatpush1.bf16.msra.mxu0 %v1584
    %2267 = vmatprep.subr.bf16.mxu0 %v1589
    %2268 = vmatpush1.bf16.msra.mxu0 %v1588
    %2269 = vmatprep.subr.bf16.mxu0 %v1593
    %2270 = vmatpush1.bf16.msra.mxu0 %v1592
    %2271 = vmatprep.subr.bf16.mxu0 %v1597
    %2272 = vmatpush1.bf16.msra.mxu0 %v1596
    %2273 = vmatprep.subr.bf16.mxu0 %v1601
    %2274 = vmatpush1.bf16.msra.mxu0 %v1600
    %2275 = vmatprep.subr.bf16.mxu0 %v1605
    %2276 = vmatpush1.bf16.msra.mxu0 %v1604
    %2277 = vmatprep.subr.bf16.mxu0 %v1609
    %2278 = vmatpush1.bf16.msra.mxu0 %v1608
    %2279 = vmatprep.subr.bf16.mxu0 %v1613
    %2280 = vmatpush1.bf16.msra.mxu0 %v1612
    %2281 = vmatprep.subr.bf16.mxu0 %v1617
    %2282 = vmatpush1.bf16.msra.mxu0 %v1616
    %2283 = vmatprep.subr.bf16.mxu0 %v1621
    %2284 = vmatpush1.bf16.msra.mxu0 %v1620
    %2285 = vmatprep.subr.bf16.mxu0 %v1625
    %2286 = vmatpush1.bf16.msra.mxu0 %v1624
    %2287 = vmatprep.subr.bf16.mxu0 %v1629
    %2288 = vmatpush1.bf16.msra.mxu0 %v1628
    %2289 = vmatprep.subr.bf16.mxu0 %v1633
    %2290 = vmatpush1.bf16.msra.mxu0 %v1632
    %2291 = vmatprep.subr.bf16.mxu0 %v1637
    %2292 = vmatpush1.bf16.msra.mxu0 %v1636
    %2293 = vmatprep.subr.bf16.mxu0 %v1641
    %2294 = vmatpush1.bf16.msra.mxu0 %v1640
    %2295 = vmatprep.subr.bf16.mxu0 %v1645
    %2296 = vmatpush1.bf16.msra.mxu0 %v1644
    %2297 = vmatprep.mubr.bf16.mxu0 %v82
    %2298 = vmatmul.mubr.bf16.gmra.mrb[0].mxu0 %v81
    %v2299 = vpop.f32.mrb[0].mxu0
    %v2300 = vadd.f32 %v2259, %v2299
    %v2301 = vpop.f32.mrb[0].mxu0
    %v2302 = vadd.f32 %v2261, %v2301
    %v2303 = vpop.f32.mrb[0].mxu0
    %v2304 = vpop.f32.mrb[0].mxu0
    %2305 = vdwg.mxu0
    %2306 = vmatprep.subr.bf16.mxu0 %v1649
    %2307 = vmatpush1.bf16.msra.mxu0 %v1648
    %2308 = vmatprep.subr.bf16.mxu0 %v1653
    %2309 = vmatpush1.bf16.msra.mxu0 %v1652
    %2310 = vmatprep.subr.bf16.mxu0 %v1657
    %2311 = vmatpush1.bf16.msra.mxu0 %v1656
    %2312 = vmatprep.subr.bf16.mxu0 %v1661
    %2313 = vmatpush1.bf16.msra.mxu0 %v1660
    %2314 = vmatprep.subr.bf16.mxu0 %v1665
    %2315 = vmatpush1.bf16.msra.mxu0 %v1664
    %2316 = vmatprep.subr.bf16.mxu0 %v1669
    %2317 = vmatpush1.bf16.msra.mxu0 %v1668
    %2318 = vmatprep.subr.bf16.mxu0 %v1673
    %2319 = vmatpush1.bf16.msra.mxu0 %v1672
    %2320 = vmatprep.subr.bf16.mxu0 %v1677
    %2321 = vmatpush1.bf16.msra.mxu0 %v1676
    %2322 = vmatprep.subr.bf16.mxu0 %v1681
    %2323 = vmatpush1.bf16.msra.mxu0 %v1680
    %2324 = vmatprep.subr.bf16.mxu0 %v1685
    %2325 = vmatpush1.bf16.msra.mxu0 %v1684
    %2326 = vmatprep.subr.bf16.mxu0 %v1689
    %2327 = vmatpush1.bf16.msra.mxu0 %v1688
    %2328 = vmatprep.subr.bf16.mxu0 %v1693
    %2329 = vmatpush1.bf16.msra.mxu0 %v1692
    %2330 = vmatprep.subr.bf16.mxu0 %v1697
    %2331 = vmatpush1.bf16.msra.mxu0 %v1696
    %2332 = vmatprep.subr.bf16.mxu0 %v1701
    %2333 = vmatpush1.bf16.msra.mxu0 %v1700
    %2334 = vmatprep.subr.bf16.mxu0 %v1705
    %2335 = vmatpush1.bf16.msra.mxu0 %v1704
    %2336 = vmatprep.subr.bf16.mxu0 %v1709
    %2337 = vmatpush1.bf16.msra.mxu0 %v1708
    %2338 = vmatprep.mubr.bf16.mxu0 %v84
    %2339 = vmatmul.mubr.bf16.gmra.mrb[0].mxu0 %v83
    %v2340 = vpop.f32.mrb[0].mxu0
    %v2341 = vadd.f32 %v2300, %v2340
    %v2342 = vpop.f32.mrb[0].mxu0
    %v2343 = vadd.f32 %v2302, %v2342
    %v2344 = vpop.f32.mrb[0].mxu0
    %v2345 = vpop.f32.mrb[0].mxu0
    %2346 = vdwg.mxu0
    %2347 = vmatprep.subr.bf16.mxu0 %v1713
    %2348 = vmatpush1.bf16.msra.mxu0 %v1712
    %2349 = vmatprep.subr.bf16.mxu0 %v1717
    %2350 = vmatpush1.bf16.msra.mxu0 %v1716
    %2351 = vmatprep.subr.bf16.mxu0 %v1721
    %2352 = vmatpush1.bf16.msra.mxu0 %v1720
    %2353 = vmatprep.subr.bf16.mxu0 %v1725
    %2354 = vmatpush1.bf16.msra.mxu0 %v1724
    %2355 = vmatprep.subr.bf16.mxu0 %v1729
    %2356 = vmatpush1.bf16.msra.mxu0 %v1728
    %2357 = vmatprep.subr.bf16.mxu0 %v1733
    %2358 = vmatpush1.bf16.msra.mxu0 %v1732
    %2359 = vmatprep.subr.bf16.mxu0 %v1737
    %2360 = vmatpush1.bf16.msra.mxu0 %v1736
    %2361 = vmatprep.subr.bf16.mxu0 %v1741
    %2362 = vmatpush1.bf16.msra.mxu0 %v1740
    %2363 = vmatprep.subr.bf16.mxu0 %v1745
    %2364 = vmatpush1.bf16.msra.mxu0 %v1744
    %2365 = vmatprep.subr.bf16.mxu0 %v1749
    %2366 = vmatpush1.bf16.msra.mxu0 %v1748
    %2367 = vmatprep.subr.bf16.mxu0 %v1753
    %2368 = vmatpush1.bf16.msra.mxu0 %v1752
    %2369 = vmatprep.subr.bf16.mxu0 %v1757
    %2370 = vmatpush1.bf16.msra.mxu0 %v1756
    %2371 = vmatprep.subr.bf16.mxu0 %v1761
    %2372 = vmatpush1.bf16.msra.mxu0 %v1760
    %2373 = vmatprep.subr.bf16.mxu0 %v1765
    %2374 = vmatpush1.bf16.msra.mxu0 %v1764
    %2375 = vmatprep.subr.bf16.mxu0 %v1769
    %2376 = vmatpush1.bf16.msra.mxu0 %v1768
    %2377 = vmatprep.subr.bf16.mxu0 %v1773
    %2378 = vmatpush1.bf16.msra.mxu0 %v1772
    %2379 = vmatprep.mubr.bf16.mxu0 %v86
    %2380 = vmatmul.mubr.bf16.gmra.mrb[0].mxu0 %v85
    %v2381 = vpop.f32.mrb[0].mxu0
    %v2382 = vadd.f32 %v2341, %v2381
    %v2383 = vpop.f32.mrb[0].mxu0
    %v2384 = vadd.f32 %v2343, %v2383
    %v2385 = vpop.f32.mrb[0].mxu0
    %v2386 = vpop.f32.mrb[0].mxu0
    %2387 = vdwg.mxu0
    %2388 = vmatprep.subr.bf16.mxu0 %v1777
    %2389 = vmatpush1.bf16.msra.mxu0 %v1776
    %2390 = vmatprep.subr.bf16.mxu0 %v1781
    %2391 = vmatpush1.bf16.msra.mxu0 %v1780
    %2392 = vmatprep.subr.bf16.mxu0 %v1785
    %2393 = vmatpush1.bf16.msra.mxu0 %v1784
    %2394 = vmatprep.subr.bf16.mxu0 %v1789
    %2395 = vmatpush1.bf16.msra.mxu0 %v1788
    %2396 = vmatprep.subr.bf16.mxu0 %v1793
    %2397 = vmatpush1.bf16.msra.mxu0 %v1792
    %2398 = vmatprep.subr.bf16.mxu0 %v1797
    %2399 = vmatpush1.bf16.msra.mxu0 %v1796
    %2400 = vmatprep.subr.bf16.mxu0 %v1801
    %2401 = vmatpush1.bf16.msra.mxu0 %v1800
    %2402 = vmatprep.subr.bf16.mxu0 %v1805
    %2403 = vmatpush1.bf16.msra.mxu0 %v1804
    %2404 = vmatprep.subr.bf16.mxu0 %v1809
    %2405 = vmatpush1.bf16.msra.mxu0 %v1808
    %2406 = vmatprep.subr.bf16.mxu0 %v1813
    %2407 = vmatpush1.bf16.msra.mxu0 %v1812
    %2408 = vmatprep.subr.bf16.mxu0 %v1817
    %2409 = vmatpush1.bf16.msra.mxu0 %v1816
    %2410 = vmatprep.subr.bf16.mxu0 %v1821
    %2411 = vmatpush1.bf16.msra.mxu0 %v1820
    %2412 = vmatprep.subr.bf16.mxu0 %v1825
    %2413 = vmatpush1.bf16.msra.mxu0 %v1824
    %2414 = vmatprep.subr.bf16.mxu0 %v1829
    %2415 = vmatpush1.bf16.msra.mxu0 %v1828
    %2416 = vmatprep.subr.bf16.mxu0 %v1833
    %2417 = vmatpush1.bf16.msra.mxu0 %v1832
    %2418 = vmatprep.subr.bf16.mxu0 %v1837
    %2419 = vmatpush1.bf16.msra.mxu0 %v1836
    %2420 = vmatprep.mubr.bf16.mxu0 %v88
    %2421 = vmatmul.mubr.bf16.gmra.mrb[0].mxu0 %v87
    %v2422 = vpop.f32.mrb[0].mxu0
    %v2423 = vadd.f32 %v2382, %v2422
    %v2424 = vpop.f32.mrb[0].mxu0
    %v2425 = vadd.f32 %v2384, %v2424
    %v2426 = vpop.f32.mrb[0].mxu0
    %v2427 = vpop.f32.mrb[0].mxu0
    %2428 = vdwg.mxu0
    %2429 = vmatprep.subr.bf16.mxu0 %v1841
    %2430 = vmatpush1.bf16.msra.mxu0 %v1840
    %2431 = vmatprep.subr.bf16.mxu0 %v1845
    %2432 = vmatpush1.bf16.msra.mxu0 %v1844
    %2433 = vmatprep.subr.bf16.mxu0 %v1849
    %2434 = vmatpush1.bf16.msra.mxu0 %v1848
    %2435 = vmatprep.subr.bf16.mxu0 %v1853
    %2436 = vmatpush1.bf16.msra.mxu0 %v1852
    %2437 = vmatprep.subr.bf16.mxu0 %v1857
    %2438 = vmatpush1.bf16.msra.mxu0 %v1856
    %2439 = vmatprep.subr.bf16.mxu0 %v1861
    %2440 = vmatpush1.bf16.msra.mxu0 %v1860
    %2441 = vmatprep.subr.bf16.mxu0 %v1865
    %2442 = vmatpush1.bf16.msra.mxu0 %v1864
    %2443 = vmatprep.subr.bf16.mxu0 %v1869
    %2444 = vmatpush1.bf16.msra.mxu0 %v1868
    %2445 = vmatprep.subr.bf16.mxu0 0
    %2446 = vmatpush1.bf16.msra.mxu0 0
    %2447 = vmatprep.subr.bf16.mxu0 0
    %2448 = vmatpush1.bf16.msra.mxu0 0
    %2449 = vmatprep.subr.bf16.mxu0 0
    %2450 = vmatpush1.bf16.msra.mxu0 0
    %2451 = vmatprep.subr.bf16.mxu0 0
    %2452 = vmatpush1.bf16.msra.mxu0 0
    %2453 = vmatprep.subr.bf16.mxu0 0
    %2454 = vmatpush1.bf16.msra.mxu0 0
    %2455 = vmatprep.subr.bf16.mxu0 0
    %2456 = vmatpush1.bf16.msra.mxu0 0
    %2457 = vmatprep.subr.bf16.mxu0 0
    %2458 = vmatpush1.bf16.msra.mxu0 0
    %2459 = vmatprep.subr.bf16.mxu0 0
    %2460 = vmatpush1.bf16.msra.mxu0 0
    %2461 = vmatprep.mubr.bf16.mxu0 0
    %2462 = vmatmul.mubr.bf16.gmra.mrb[0].mxu0 %v89
    %v2463 = vpop.f32.mrb[0].mxu0
    %v2464 = vadd.f32 %v2423, %v2463
    %v2465 = vpop.f32.mrb[0].mxu0
    %v2466 = vadd.f32 %v2425, %v2465
    %v2467 = vpop.f32.mrb[0].mxu0
    %v2468 = vpop.f32.mrb[0].mxu0
    %2469 = vdwg.mxu0
    %2470 = vmatprep.subr.bf16.mxu0 %v1523
    %2471 = vmatpush1.bf16.msra.mxu0 %v1522
    %2472 = vmatprep.subr.bf16.mxu0 %v1527
    %2473 = vmatpush1.bf16.msra.mxu0 %v1526
    %2474 = vmatprep.subr.bf16.mxu0 %v1531
    %2475 = vmatpush1.bf16.msra.mxu0 %v1530
    %2476 = vmatprep.subr.bf16.mxu0 %v1535
    %2477 = vmatpush1.bf16.msra.mxu0 %v1534
    %2478 = vmatprep.subr.bf16.mxu0 %v1539
    %2479 = vmatpush1.bf16.msra.mxu0 %v1538
    %2480 = vmatprep.subr.bf16.mxu0 %v1543
    %2481 = vmatpush1.bf16.msra.mxu0 %v1542
    %2482 = vmatprep.subr.bf16.mxu0 %v1547
    %2483 = vmatpush1.bf16.msra.mxu0 %v1546
    %2484 = vmatprep.subr.bf16.mxu0 %v1551
    %2485 = vmatpush1.bf16.msra.mxu0 %v1550
    %2486 = vmatprep.subr.bf16.mxu0 %v1555
    %2487 = vmatpush1.bf16.msra.mxu0 %v1554
    %2488 = vmatprep.subr.bf16.mxu0 %v1559
    %2489 = vmatpush1.bf16.msra.mxu0 %v1558
    %2490 = vmatprep.subr.bf16.mxu0 %v1563
    %2491 = vmatpush1.bf16.msra.mxu0 %v1562
    %2492 = vmatprep.subr.bf16.mxu0 %v1567
    %2493 = vmatpush1.bf16.msra.mxu0 %v1566
    %2494 = vmatprep.subr.bf16.mxu0 %v1571
    %2495 = vmatpush1.bf16.msra.mxu0 %v1570
    %2496 = vmatprep.subr.bf16.mxu0 %v1575
    %2497 = vmatpush1.bf16.msra.mxu0 %v1574
    %2498 = vmatprep.subr.bf16.mxu0 %v1579
    %2499 = vmatpush1.bf16.msra.mxu0 %v1578
    %2500 = vmatprep.subr.bf16.mxu0 %v1583
    %2501 = vmatpush1.bf16.msra.mxu0 %v1582
    %2502 = vmatprep.mubr.bf16.mxu0 %v80
    %2503 = vmatmul.mubr.bf16.gmra.mrb[0].mxu0 %v79
    %v2504 = vpop.f32.mrb[0].mxu0
    %v2505 = vadd.f32 %v455, %v2504
    %v2506 = vpop.f32.mrb[0].mxu0
    %v2507 = vadd.f32 %v459, %v2506
    %v2508 = vpop.f32.mrb[0].mxu0
    %v2509 = vpop.f32.mrb[0].mxu0
    %2510 = vdwg.mxu0
    %2511 = vmatprep.subr.bf16.mxu0 %v1587
    %2512 = vmatpush1.bf16.msra.mxu0 %v1586
    %2513 = vmatprep.subr.bf16.mxu0 %v1591
    %2514 = vmatpush1.bf16.msra.mxu0 %v1590
    %2515 = vmatprep.subr.bf16.mxu0 %v1595
    %2516 = vmatpush1.bf16.msra.mxu0 %v1594
    %2517 = vmatprep.subr.bf16.mxu0 %v1599
    %2518 = vmatpush1.bf16.msra.mxu0 %v1598
    %2519 = vmatprep.subr.bf16.mxu0 %v1603
    %2520 = vmatpush1.bf16.msra.mxu0 %v1602
    %2521 = vmatprep.subr.bf16.mxu0 %v1607
    %2522 = vmatpush1.bf16.msra.mxu0 %v1606
    %2523 = vmatprep.subr.bf16.mxu0 %v1611
    %2524 = vmatpush1.bf16.msra.mxu0 %v1610
    %2525 = vmatprep.subr.bf16.mxu0 %v1615
    %2526 = vmatpush1.bf16.msra.mxu0 %v1614
    %2527 = vmatprep.subr.bf16.mxu0 %v1619
    %2528 = vmatpush1.bf16.msra.mxu0 %v1618
    %2529 = vmatprep.subr.bf16.mxu0 %v1623
    %2530 = vmatpush1.bf16.msra.mxu0 %v1622
    %2531 = vmatprep.subr.bf16.mxu0 %v1627
    %2532 = vmatpush1.bf16.msra.mxu0 %v1626
    %2533 = vmatprep.subr.bf16.mxu0 %v1631
    %2534 = vmatpush1.bf16.msra.mxu0 %v1630
    %2535 = vmatprep.subr.bf16.mxu0 %v1635
    %2536 = vmatpush1.bf16.msra.mxu0 %v1634
    %2537 = vmatprep.subr.bf16.mxu0 %v1639
    %2538 = vmatpush1.bf16.msra.mxu0 %v1638
    %2539 = vmatprep.subr.bf16.mxu0 %v1643
    %2540 = vmatpush1.bf16.msra.mxu0 %v1642
    %2541 = vmatprep.subr.bf16.mxu0 %v1647
    %2542 = vmatpush1.bf16.msra.mxu0 %v1646
    %2543 = vmatprep.mubr.bf16.mxu0 %v82
    %2544 = vmatmul.mubr.bf16.gmra.mrb[0].mxu0 %v81
    %v2545 = vpop.f32.mrb[0].mxu0
    %v2546 = vadd.f32 %v2505, %v2545
    %v2547 = vpop.f32.mrb[0].mxu0
    %v2548 = vadd.f32 %v2507, %v2547
    %v2549 = vpop.f32.mrb[0].mxu0
    %v2550 = vpop.f32.mrb[0].mxu0
    %2551 = vdwg.mxu0
    %2552 = vmatprep.subr.bf16.mxu0 %v1651
    %2553 = vmatpush1.bf16.msra.mxu0 %v1650
    %2554 = vmatprep.subr.bf16.mxu0 %v1655
    %2555 = vmatpush1.bf16.msra.mxu0 %v1654
    %2556 = vmatprep.subr.bf16.mxu0 %v1659
    %2557 = vmatpush1.bf16.msra.mxu0 %v1658
    %2558 = vmatprep.subr.bf16.mxu0 %v1663
    %2559 = vmatpush1.bf16.msra.mxu0 %v1662
    %2560 = vmatprep.subr.bf16.mxu0 %v1667
    %2561 = vmatpush1.bf16.msra.mxu0 %v1666
    %2562 = vmatprep.subr.bf16.mxu0 %v1671
    %2563 = vmatpush1.bf16.msra.mxu0 %v1670
    %2564 = vmatprep.subr.bf16.mxu0 %v1675
    %2565 = vmatpush1.bf16.msra.mxu0 %v1674
    %2566 = vmatprep.subr.bf16.mxu0 %v1679
    %2567 = vmatpush1.bf16.msra.mxu0 %v1678
    %2568 = vmatprep.subr.bf16.mxu0 %v1683
    %2569 = vmatpush1.bf16.msra.mxu0 %v1682
    %2570 = vmatprep.subr.bf16.mxu0 %v1687
    %2571 = vmatpush1.bf16.msra.mxu0 %v1686
    %2572 = vmatprep.subr.bf16.mxu0 %v1691
    %2573 = vmatpush1.bf16.msra.mxu0 %v1690
    %2574 = vmatprep.subr.bf16.mxu0 %v1695
    %2575 = vmatpush1.bf16.msra.mxu0 %v1694
    %2576 = vmatprep.subr.bf16.mxu0 %v1699
    %2577 = vmatpush1.bf16.msra.mxu0 %v1698
    %2578 = vmatprep.subr.bf16.mxu0 %v1703
    %2579 = vmatpush1.bf16.msra.mxu0 %v1702
    %2580 = vmatprep.subr.bf16.mxu0 %v1707
    %2581 = vmatpush1.bf16.msra.mxu0 %v1706
    %2582 = vmatprep.subr.bf16.mxu0 %v1711
    %2583 = vmatpush1.bf16.msra.mxu0 %v1710
    %2584 = vmatprep.mubr.bf16.mxu0 %v84
    %2585 = vmatmul.mubr.bf16.gmra.mrb[0].mxu0 %v83
    %v2586 = vpop.f32.mrb[0].mxu0
    %v2587 = vadd.f32 %v2546, %v2586
    %v2588 = vpop.f32.mrb[0].mxu0
    %v2589 = vadd.f32 %v2548, %v2588
    %v2590 = vpop.f32.mrb[0].mxu0
    %v2591 = vpop.f32.mrb[0].mxu0
    %2592 = vdwg.mxu0
    %2593 = vmatprep.subr.bf16.mxu0 %v1715
    %2594 = vmatpush1.bf16.msra.mxu0 %v1714
    %2595 = vmatprep.subr.bf16.mxu0 %v1719
    %2596 = vmatpush1.bf16.msra.mxu0 %v1718
    %2597 = vmatprep.subr.bf16.mxu0 %v1723
    %2598 = vmatpush1.bf16.msra.mxu0 %v1722
    %2599 = vmatprep.subr.bf16.mxu0 %v1727
    %2600 = vmatpush1.bf16.msra.mxu0 %v1726
    %2601 = vmatprep.subr.bf16.mxu0 %v1731
    %2602 = vmatpush1.bf16.msra.mxu0 %v1730
    %2603 = vmatprep.subr.bf16.mxu0 %v1735
    %2604 = vmatpush1.bf16.msra.mxu0 %v1734
    %2605 = vmatprep.subr.bf16.mxu0 %v1739
    %2606 = vmatpush1.bf16.msra.mxu0 %v1738
    %2607 = vmatprep.subr.bf16.mxu0 %v1743
    %2608 = vmatpush1.bf16.msra.mxu0 %v1742
    %2609 = vmatprep.subr.bf16.mxu0 %v1747
    %2610 = vmatpush1.bf16.msra.mxu0 %v1746
    %2611 = vmatprep.subr.bf16.mxu0 %v1751
    %2612 = vmatpush1.bf16.msra.mxu0 %v1750
    %2613 = vmatprep.subr.bf16.mxu0 %v1755
    %2614 = vmatpush1.bf16.msra.mxu0 %v1754
    %2615 = vmatprep.subr.bf16.mxu0 %v1759
    %2616 = vmatpush1.bf16.msra.mxu0 %v1758
    %2617 = vmatprep.subr.bf16.mxu0 %v1763
    %2618 = vmatpush1.bf16.msra.mxu0 %v1762
    %2619 = vmatprep.subr.bf16.mxu0 %v1767
    %2620 = vmatpush1.bf16.msra.mxu0 %v1766
    %2621 = vmatprep.subr.bf16.mxu0 %v1771
    %2622 = vmatpush1.bf16.msra.mxu0 %v1770
    %2623 = vmatprep.subr.bf16.mxu0 %v1775
    %2624 = vmatpush1.bf16.msra.mxu0 %v1774
    %2625 = vmatprep.mubr.bf16.mxu0 %v86
    %2626 = vmatmul.mubr.bf16.gmra.mrb[0].mxu0 %v85
    %v2627 = vpop.f32.mrb[0].mxu0
    %v2628 = vadd.f32 %v2587, %v2627
    %v2629 = vpop.f32.mrb[0].mxu0
    %v2630 = vadd.f32 %v2589, %v2629
    %v2631 = vpop.f32.mrb[0].mxu0
    %v2632 = vpop.f32.mrb[0].mxu0
    %2633 = vdwg.mxu0
    %2634 = vmatprep.subr.bf16.mxu0 %v1779
    %2635 = vmatpush1.bf16.msra.mxu0 %v1778
    %2636 = vmatprep.subr.bf16.mxu0 %v1783
    %2637 = vmatpush1.bf16.msra.mxu0 %v1782
    %2638 = vmatprep.subr.bf16.mxu0 %v1787
    %2639 = vmatpush1.bf16.msra.mxu0 %v1786
    %2640 = vmatprep.subr.bf16.mxu0 %v1791
    %2641 = vmatpush1.bf16.msra.mxu0 %v1790
    %2642 = vmatprep.subr.bf16.mxu0 %v1795
    %2643 = vmatpush1.bf16.msra.mxu0 %v1794
    %2644 = vmatprep.subr.bf16.mxu0 %v1799
    %2645 = vmatpush1.bf16.msra.mxu0 %v1798
    %2646 = vmatprep.subr.bf16.mxu0 %v1803
    %2647 = vmatpush1.bf16.msra.mxu0 %v1802
    %2648 = vmatprep.subr.bf16.mxu0 %v1807
    %2649 = vmatpush1.bf16.msra.mxu0 %v1806
    %2650 = vmatprep.subr.bf16.mxu0 %v1811
    %2651 = vmatpush1.bf16.msra.mxu0 %v1810
    %2652 = vmatprep.subr.bf16.mxu0 %v1815
    %2653 = vmatpush1.bf16.msra.mxu0 %v1814
    %2654 = vmatprep.subr.bf16.mxu0 %v1819
    %2655 = vmatpush1.bf16.msra.mxu0 %v1818
    %2656 = vmatprep.subr.bf16.mxu0 %v1823
    %2657 = vmatpush1.bf16.msra.mxu0 %v1822
    %2658 = vmatprep.subr.bf16.mxu0 %v1827
    %2659 = vmatpush1.bf16.msra.mxu0 %v1826
    %2660 = vmatprep.subr.bf16.mxu0 %v1831
    %2661 = vmatpush1.bf16.msra.mxu0 %v1830
    %2662 = vmatprep.subr.bf16.mxu0 %v1835
    %2663 = vmatpush1.bf16.msra.mxu0 %v1834
    %2664 = vmatprep.subr.bf16.mxu0 %v1839
    %2665 = vmatpush1.bf16.msra.mxu0 %v1838
    %2666 = vmatprep.mubr.bf16.mxu0 %v88
    %2667 = vmatmul.mubr.bf16.gmra.mrb[0].mxu0 %v87
    %v2668 = vpop.f32.mrb[0].mxu0
    %v2669 = vadd.f32 %v2628, %v2668
    %v2670 = vpop.f32.mrb[0].mxu0
    %v2671 = vadd.f32 %v2630, %v2670
    %v2672 = vpop.f32.mrb[0].mxu0
    %v2673 = vpop.f32.mrb[0].mxu0
    %2674 = vdwg.mxu0
    %2675 = vmatprep.subr.bf16.mxu0 %v1843
    %2676 = vmatpush1.bf16.msra.mxu0 %v1842
    %2677 = vmatprep.subr.bf16.mxu0 %v1847
    %2678 = vmatpush1.bf16.msra.mxu0 %v1846
    %2679 = vmatprep.subr.bf16.mxu0 %v1851
    %2680 = vmatpush1.bf16.msra.mxu0 %v1850
    %2681 = vmatprep.subr.bf16.mxu0 %v1855
    %2682 = vmatpush1.bf16.msra.mxu0 %v1854
    %2683 = vmatprep.subr.bf16.mxu0 %v1859
    %2684 = vmatpush1.bf16.msra.mxu0 %v1858
    %2685 = vmatprep.subr.bf16.mxu0 %v1863
    %2686 = vmatpush1.bf16.msra.mxu0 %v1862
    %2687 = vmatprep.subr.bf16.mxu0 %v1867
    %2688 = vmatpush1.bf16.msra.mxu0 %v1866
    %2689 = vmatprep.subr.bf16.mxu0 %v1871
    %2690 = vmatpush1.bf16.msra.mxu0 %v1870
    %2691 = vmatprep.subr.bf16.mxu0 0
    %2692 = vmatpush1.bf16.msra.mxu0 0
    %2693 = vmatprep.subr.bf16.mxu0 0
    %2694 = vmatpush1.bf16.msra.mxu0 0
    %2695 = vmatprep.subr.bf16.mxu0 0
    %2696 = vmatpush1.bf16.msra.mxu0 0
    %2697 = vmatprep.subr.bf16.mxu0 0
    %2698 = vmatpush1.bf16.msra.mxu0 0
    %2699 = vmatprep.subr.bf16.mxu0 0
    %2700 = vmatpush1.bf16.msra.mxu0 0
    %2701 = vmatprep.subr.bf16.mxu0 0
    %2702 = vmatpush1.bf16.msra.mxu0 0
    %2703 = vmatprep.subr.bf16.mxu0 0
    %2704 = vmatpush1.bf16.msra.mxu0 0
    %2705 = vmatprep.subr.bf16.mxu0 0
    %2706 = vmatpush1.bf16.msra.mxu0 0
    %2707 = vmatprep.mubr.bf16.mxu0 0
    %2708 = vmatmul.mubr.bf16.gmra.mrb[0].mxu0 %v89
    %v2709 = vpop.f32.mrb[0].mxu0
    %v2710 = vadd.f32 %v2669, %v2709
    %v2711 = vpop.f32.mrb[0].mxu0
    %v2712 = vadd.f32 %v2671, %v2711
    %v2713 = vpop.f32.mrb[0].mxu0
    %v2714 = vpop.f32.mrb[0].mxu0
    %2715 = vdwg.mxu0
    %v2716 = vld [vmem:[#allocation2] sm:$0xff]
    %v2717 = vld [vmem:[#allocation2 + $0x8] sm:$0xff]
    %v2718 = vld [vmem:[#allocation2 + $0x10] sm:$0xff]
    %v2719 = vld [vmem:[#allocation2 + $0x18] sm:$0xff]
    %v2720 = vmul.f32 %v2716, %v2464
    %v2721 = vmul.f32 %v2717, %v2466
    %v2722 = vmul.f32 %v2718, %v2710
    %v2723 = vmul.f32 %v2719, %v2712
    %v2724 = vadd.f32 %v2720, %v2721
    %v2725 = vadd.f32 %v2724, %v2722
    %v2726 = vadd.f32 %v2725, %v2723
    %2727 = vadd.xlane.f32.xlu0 %v2726
    %v2728 = vpop.xlane.xlu0 %2727
    %v2729 = vsub.f32 %v2728, %v2728
    %v2730 = vmul.f32 %v2729, 1.442695
    %v2731 = vpow.pop %v2730
    %v2732 = vmul.f32 %v2731, %v2464
    %v2733 = vmul.f32 %v2731, %v2466
    %v2734 = vmul.f32 %v2731, %v2710
    %v2735 = vmul.f32 %v2731, %v2712
    %2736 = vst [vmem:[#allocation10] sm:$0xff] %v2716
    %2737 = vst [vmem:[#allocation10 + $0x8] sm:$0xff] %v2717
    %2738 = vst [vmem:[#allocation10 + $0x10] sm:$0xff] %v2718
    %2739 = vst [vmem:[#allocation10 + $0x18] sm:$0xff] %v2719
    %2740 = vst [vmem:[#allocation10 + $0x20] sm:$0xff] %v2732
    %2741 = vst [vmem:[#allocation10 + $0x28] sm:$0xff] %v2733
    %2742 = vst [vmem:[#allocation10 + $0x30] sm:$0xff] %v2734
    %2743 = vst [vmem:[#allocation10 + $0x38] sm:$0xff] %v2735
    // Predicated region
    $region34: #{qam_forward.1} parent=1 // pred_check
      _
    $region35: #{qam_forward.1} parent=1 // pred_check_branch
      %2745 = sbr.rel (0) target = $region37
    $region36: #{qam_forward.1} parent=1 // pred_region
      %s2747 = ssub.s32 1024, 1024
      %2748 = vsyncadd [#allocation4], %s2747
      %s2750 = sshll.u32 [#allocation10], 4
      %s2751 = int_to_ptr.vmem [resolvable:$true] %s2750
      %2753 = dma.vmem_to_hbm [thread:$0]  %s2751, 1024, %s4, [#allocation4]
    $region37: #{qam_forward.1} parent=1 // pred_fallthru
      _
    // Predicated region
    $region38: #{qam_forward.1} parent=1 // pred_check
      _
    $region39: #{qam_forward.1} parent=1 // pred_check_branch
      %2755 = sbr.rel (0) target = $region41
    $region40: #{qam_forward.1} parent=1 // pred_region
      %2756 = dma.done [#allocation4], 1024
    $region41: #{qam_forward.1} parent=1 // pred_fallthru
      _
    %2757 = vsyncpa [#allocation3], 1
    %2758 = vsyncpa [#allocation6], 1
    %2759 = vsyncpa [#allocation9], 1
    %2760 = vsyncpa [#allocation4], 1

</llo_original>
